<compile_context>
chip_gen: v7x
topology: tpu7x:2x2x1
jax: 0.10.0
libtpu: 0.0.40
codegen_flags: <defaults>
</compile_context>

<pallas_src>
import jax
import jax.numpy as jnp
from jax.experimental import pallas as pl
from jax.experimental.pallas import tpu as pltpu


def _leaky_relu(v, slope=0.01):
    # slope < 1  =>  leaky_relu(v) == max(v, slope*v): one vmul + one vmax (no cmp/select)
    return jnp.maximum(v, slope * v)


def ddqn12_kernel(x_ref,
                  w1_ref, b1_ref, w2_ref, b2_ref, w3_ref, b3_ref,
                  w4_ref, b4_ref, w5_ref, b5_ref, w6_ref, b6_ref,
                  out_ref):
    """One batch tile of the MLP. Activations are (features, TB); batch is on lanes."""
    wdt = w1_ref.dtype
    h = x_ref[...].astype(wdt)                                 # (input_dim, TB)
    for w_ref, b_ref in ((w1_ref, b1_ref), (w2_ref, b2_ref), (w3_ref, b3_ref),
                         (w4_ref, b4_ref), (w5_ref, b5_ref)):
        a = jnp.dot(w_ref[...], h, preferred_element_type=jnp.float32) + b_ref[...]
        h = _leaky_relu(a).astype(wdt)                         # elementwise in f32, feed MXU in wdt
    y = jnp.dot(w6_ref[...], h, preferred_element_type=jnp.float32) + b6_ref[...]
    out_ref[...] = jnp.maximum(y, 0.0)                         # final ReLU, (output_dim, TB)


def make_params(input_dim, output_dim, key, weight_dtype=jnp.float32):
    """PyTorch-style uniform fan-in init. Weights (out, in); biases (out, 1) kept f32."""
    dims = [input_dim,
            16 * input_dim, 8 * input_dim, 4 * input_dim, 2 * input_dim, input_dim,
            output_dim]
    params = []
    for i in range(6):
        fan_in, fan_out = dims[i], dims[i + 1]
        key, kw, kb = jax.random.split(key, 3)
        bound = 1.0 / (fan_in ** 0.5)
        w = jax.random.uniform(kw, (fan_out, fan_in), jnp.float32, -bound, bound)
        b = jax.random.uniform(kb, (fan_out, 1), jnp.float32, -bound, bound)
        params.append((w.astype(weight_dtype), b))
    return params


def ddqn12_forward(x, params, *, tile_b=256):
    """x: (B, input_dim) f32  ->  (B, output_dim) f32."""
    batch, input_dim = x.shape
    output_dim = params[-1][0].shape[0]

    n_tiles = pl.cdiv(batch, tile_b)
    padded = n_tiles * tile_b

    xt = x.T                                                   # (input_dim, B): batch -> lanes
    if padded != batch:
        xt = jnp.pad(xt, ((0, 0), (0, padded - batch)))

    flat = [t for wb in params for t in wb]

    in_specs = [pl.BlockSpec((input_dim, tile_b), lambda i: (0, i))]
    for t in flat:
        # constant block index -> weights/biases stay resident in VMEM across the grid
        in_specs.append(pl.BlockSpec(t.shape, lambda i: (0, 0)))
    out_spec = pl.BlockSpec((output_dim, tile_b), lambda i: (0, i))

    flops = 2 * padded * sum(int(w.shape[0]) * int(w.shape[1]) for w, _ in params)
    bytes_accessed = (sum(int(t.size) * t.dtype.itemsize for t in flat)
                      + padded * (input_dim + output_dim) * 4)
    cost = pl.CostEstimate(flops=flops, transcendentals=0, bytes_accessed=bytes_accessed)

    yt = pl.pallas_call(
        ddqn12_kernel,
        out_shape=jax.ShapeDtypeStruct((output_dim, padded), jnp.float32),
        grid=(n_tiles,),
        in_specs=in_specs,
        out_specs=out_spec,
        compiler_params=pltpu.CompilerParams(
            dimension_semantics=("parallel",)),                # batch tiles independent
        cost_estimate=cost,
    )(xt, *flat)

    return yt.T[:batch]


def ddqn12_reference(x, params):
    h = x
    for i, (w, b) in enumerate(params):
        h = h @ w.astype(jnp.float32).T + b.reshape(1, -1)
        h = jnp.where(h > 0, h, 0.01 * h) if i < 5 else jnp.maximum(h, 0.0)
    return h


if __name__ == "__main__":
    input_dim, output_dim = 16, 8
    batch = 300            # deliberately not a multiple of the tile -> exercises padding
    tile_b = 256           # lane-dense batch tile (multiple of 128), fits easily in VMEM

    key = jax.random.PRNGKey(0)
    key, kx = jax.random.split(key)
    x = jax.random.normal(kx, (batch, input_dim), jnp.float32)

    # f32 weights: exact match vs reference
    params_f32 = make_params(input_dim, output_dim, key, jnp.float32)
    out = jax.block_until_ready(ddqn12_forward(x, params_f32, tile_b=tile_b))
    ref = ddqn12_reference(x, params_f32)
    assert out.shape == (batch, output_dim)
    assert jnp.allclose(out, ref, atol=1e-5, rtol=1e-5), "f32 mismatch vs reference"

    # bf16 weights / bf16 MXU feed, f32 accumulate (v6e/v7x fast path): loose check
    params_bf16 = [(w.astype(jnp.bfloat16), b) for w, b in params_f32]
    out_bf = jax.block_until_ready(ddqn12_forward(x, params_bf16, tile_b=tile_b))
    assert out_bf.shape == (batch, output_dim)
    assert jnp.allclose(out_bf, ref, atol=5e-2, rtol=5e-2), "bf16 mismatch vs reference"

    print("KERNEL_OK")
</pallas_src>

<mosaic_0001>
module attributes {stable_mosaic.version = 11 : i64} {
  func.func @ddqn12_kernel(%arg0: i32, %arg1: memref<16x256xf32, #tpu.memory_space<vmem>>, %arg2: memref<256x16xf32, #tpu.memory_space<vmem>>, %arg3: memref<256x1xf32, #tpu.memory_space<vmem>>, %arg4: memref<128x256xf32, #tpu.memory_space<vmem>>, %arg5: memref<128x1xf32, #tpu.memory_space<vmem>>, %arg6: memref<64x128xf32, #tpu.memory_space<vmem>>, %arg7: memref<64x1xf32, #tpu.memory_space<vmem>>, %arg8: memref<32x64xf32, #tpu.memory_space<vmem>>, %arg9: memref<32x1xf32, #tpu.memory_space<vmem>>, %arg10: memref<16x32xf32, #tpu.memory_space<vmem>>, %arg11: memref<16x1xf32, #tpu.memory_space<vmem>>, %arg12: memref<8x16xf32, #tpu.memory_space<vmem>>, %arg13: memref<8x1xf32, #tpu.memory_space<vmem>>, %arg14: memref<8x256xf32, #tpu.memory_space<vmem>>) attributes {dimension_semantics = [#tpu.dimension_semantics<parallel>], iteration_bounds = array<i64: 2>, scalar_prefetch = 0 : i64, scratch_operands = 0 : i64, tpu.core_type = #tpu.core_type<tc>, window_params = [{transform_indices = @transform_0, window_bounds = array<i64: 16, 256>}, {pipeline_mode = #tpu.pipeline_mode<synchronous>, transform_indices = @transform_1, window_bounds = array<i64: 256, 16>}, {pipeline_mode = #tpu.pipeline_mode<synchronous>, transform_indices = @transform_2, window_bounds = array<i64: 256, 1>}, {pipeline_mode = #tpu.pipeline_mode<synchronous>, transform_indices = @transform_3, window_bounds = array<i64: 128, 256>}, {pipeline_mode = #tpu.pipeline_mode<synchronous>, transform_indices = @transform_4, window_bounds = array<i64: 128, 1>}, {pipeline_mode = #tpu.pipeline_mode<synchronous>, transform_indices = @transform_5, window_bounds = array<i64: 64, 128>}, {pipeline_mode = #tpu.pipeline_mode<synchronous>, transform_indices = @transform_6, window_bounds = array<i64: 64, 1>}, {pipeline_mode = #tpu.pipeline_mode<synchronous>, transform_indices = @transform_7, window_bounds = array<i64: 32, 64>}, {pipeline_mode = #tpu.pipeline_mode<synchronous>, transform_indices = @transform_8, window_bounds = array<i64: 32, 1>}, {pipeline_mode = #tpu.pipeline_mode<synchronous>, transform_indices = @transform_9, window_bounds = array<i64: 16, 32>}, {pipeline_mode = #tpu.pipeline_mode<synchronous>, transform_indices = @transform_10, window_bounds = array<i64: 16, 1>}, {pipeline_mode = #tpu.pipeline_mode<synchronous>, transform_indices = @transform_11, window_bounds = array<i64: 8, 16>}, {pipeline_mode = #tpu.pipeline_mode<synchronous>, transform_indices = @transform_12, window_bounds = array<i64: 8, 1>}, {transform_indices = @transform_13, window_bounds = array<i64: 8, 256>}]} {
    %c0 = arith.constant 0 : index
    %c0_0 = arith.constant 0 : index
    %0 = vector.load %arg1[%c0, %c0_0] : memref<16x256xf32, #tpu.memory_space<vmem>>, vector<16x256xf32>
    %c0_1 = arith.constant 0 : index
    %c0_2 = arith.constant 0 : index
    %1 = vector.load %arg2[%c0_1, %c0_2] : memref<256x16xf32, #tpu.memory_space<vmem>>, vector<256x16xf32>
    %cst = arith.constant dense<0.000000e+00> : vector<256x256xf32>
    %2 = tpu.matmul %1, %0, %cst {dimension_numbers = #tpu.dot_dimension_numbers<[1], [0], [0], [1], [0, 0, 1, 1], [], []>} : vector<256x16xf32>, vector<16x256xf32>, vector<256x256xf32> -> vector<256x256xf32>
    %c0_3 = arith.constant 0 : index
    %c0_4 = arith.constant 0 : index
    %3 = vector.load %arg3[%c0_3, %c0_4] : memref<256x1xf32, #tpu.memory_space<vmem>>, vector<256x1xf32>
    %4 = vector.broadcast %3 : vector<256x1xf32> to vector<256x256xf32>
    %5 = arith.addf %2, %4 : vector<256x256xf32>
    %cst_5 = arith.constant 0.00999999977 : f32
    %6 = vector.broadcast %cst_5 : f32 to vector<256x256xf32>
    %7 = arith.mulf %6, %5 : vector<256x256xf32>
    %8 = arith.maximumf %5, %7 : vector<256x256xf32>
    %c0_6 = arith.constant 0 : index
    %c0_7 = arith.constant 0 : index
    %9 = vector.load %arg4[%c0_6, %c0_7] : memref<128x256xf32, #tpu.memory_space<vmem>>, vector<128x256xf32>
    %cst_8 = arith.constant dense<0.000000e+00> : vector<128x256xf32>
    %10 = tpu.matmul %9, %8, %cst_8 {dimension_numbers = #tpu.dot_dimension_numbers<[1], [0], [0], [1], [0, 0, 1, 1], [], []>} : vector<128x256xf32>, vector<256x256xf32>, vector<128x256xf32> -> vector<128x256xf32>
    %c0_9 = arith.constant 0 : index
    %c0_10 = arith.constant 0 : index
    %11 = vector.load %arg5[%c0_9, %c0_10] : memref<128x1xf32, #tpu.memory_space<vmem>>, vector<128x1xf32>
    %12 = vector.broadcast %11 : vector<128x1xf32> to vector<128x256xf32>
    %13 = arith.addf %10, %12 : vector<128x256xf32>
    %cst_11 = arith.constant 0.00999999977 : f32
    %14 = vector.broadcast %cst_11 : f32 to vector<128x256xf32>
    %15 = arith.mulf %14, %13 : vector<128x256xf32>
    %16 = arith.maximumf %13, %15 : vector<128x256xf32>
    %c0_12 = arith.constant 0 : index
    %c0_13 = arith.constant 0 : index
    %17 = vector.load %arg6[%c0_12, %c0_13] : memref<64x128xf32, #tpu.memory_space<vmem>>, vector<64x128xf32>
    %cst_14 = arith.constant dense<0.000000e+00> : vector<64x256xf32>
    %18 = tpu.matmul %17, %16, %cst_14 {dimension_numbers = #tpu.dot_dimension_numbers<[1], [0], [0], [1], [0, 0, 1, 1], [], []>} : vector<64x128xf32>, vector<128x256xf32>, vector<64x256xf32> -> vector<64x256xf32>
    %c0_15 = arith.constant 0 : index
    %c0_16 = arith.constant 0 : index
    %19 = vector.load %arg7[%c0_15, %c0_16] : memref<64x1xf32, #tpu.memory_space<vmem>>, vector<64x1xf32>
    %20 = vector.broadcast %19 : vector<64x1xf32> to vector<64x256xf32>
    %21 = arith.addf %18, %20 : vector<64x256xf32>
    %cst_17 = arith.constant 0.00999999977 : f32
    %22 = vector.broadcast %cst_17 : f32 to vector<64x256xf32>
    %23 = arith.mulf %22, %21 : vector<64x256xf32>
    %24 = arith.maximumf %21, %23 : vector<64x256xf32>
    %c0_18 = arith.constant 0 : index
    %c0_19 = arith.constant 0 : index
    %25 = vector.load %arg8[%c0_18, %c0_19] : memref<32x64xf32, #tpu.memory_space<vmem>>, vector<32x64xf32>
    %cst_20 = arith.constant dense<0.000000e+00> : vector<32x256xf32>
    %26 = tpu.matmul %25, %24, %cst_20 {dimension_numbers = #tpu.dot_dimension_numbers<[1], [0], [0], [1], [0, 0, 1, 1], [], []>} : vector<32x64xf32>, vector<64x256xf32>, vector<32x256xf32> -> vector<32x256xf32>
    %c0_21 = arith.constant 0 : index
    %c0_22 = arith.constant 0 : index
    %27 = vector.load %arg9[%c0_21, %c0_22] : memref<32x1xf32, #tpu.memory_space<vmem>>, vector<32x1xf32>
    %28 = vector.broadcast %27 : vector<32x1xf32> to vector<32x256xf32>
    %29 = arith.addf %26, %28 : vector<32x256xf32>
    %cst_23 = arith.constant 0.00999999977 : f32
    %30 = vector.broadcast %cst_23 : f32 to vector<32x256xf32>
    %31 = arith.mulf %30, %29 : vector<32x256xf32>
    %32 = arith.maximumf %29, %31 : vector<32x256xf32>
    %c0_24 = arith.constant 0 : index
    %c0_25 = arith.constant 0 : index
    %33 = vector.load %arg10[%c0_24, %c0_25] : memref<16x32xf32, #tpu.memory_space<vmem>>, vector<16x32xf32>
    %cst_26 = arith.constant dense<0.000000e+00> : vector<16x256xf32>
    %34 = tpu.matmul %33, %32, %cst_26 {dimension_numbers = #tpu.dot_dimension_numbers<[1], [0], [0], [1], [0, 0, 1, 1], [], []>} : vector<16x32xf32>, vector<32x256xf32>, vector<16x256xf32> -> vector<16x256xf32>
    %c0_27 = arith.constant 0 : index
    %c0_28 = arith.constant 0 : index
    %35 = vector.load %arg11[%c0_27, %c0_28] : memref<16x1xf32, #tpu.memory_space<vmem>>, vector<16x1xf32>
    %36 = vector.broadcast %35 : vector<16x1xf32> to vector<16x256xf32>
    %37 = arith.addf %34, %36 : vector<16x256xf32>
    %cst_29 = arith.constant 0.00999999977 : f32
    %38 = vector.broadcast %cst_29 : f32 to vector<16x256xf32>
    %39 = arith.mulf %38, %37 : vector<16x256xf32>
    %40 = arith.maximumf %37, %39 : vector<16x256xf32>
    %c0_30 = arith.constant 0 : index
    %c0_31 = arith.constant 0 : index
    %41 = vector.load %arg12[%c0_30, %c0_31] : memref<8x16xf32, #tpu.memory_space<vmem>>, vector<8x16xf32>
    %cst_32 = arith.constant dense<0.000000e+00> : vector<8x256xf32>
    %42 = tpu.matmul %41, %40, %cst_32 {dimension_numbers = #tpu.dot_dimension_numbers<[1], [0], [0], [1], [0, 0, 1, 1], [], []>} : vector<8x16xf32>, vector<16x256xf32>, vector<8x256xf32> -> vector<8x256xf32>
    %c0_33 = arith.constant 0 : index
    %c0_34 = arith.constant 0 : index
    %43 = vector.load %arg13[%c0_33, %c0_34] : memref<8x1xf32, #tpu.memory_space<vmem>>, vector<8x1xf32>
    %44 = vector.broadcast %43 : vector<8x1xf32> to vector<8x256xf32>
    %45 = arith.addf %42, %44 : vector<8x256xf32>
    %cst_35 = arith.constant 0.000000e+00 : f32
    %46 = vector.broadcast %cst_35 : f32 to vector<8x256xf32>
    %47 = arith.maximumf %45, %46 : vector<8x256xf32>
    %c0_36 = arith.constant 0 : index
    %c0_37 = arith.constant 0 : index
    %48 = vector.load %arg14[%c0_36, %c0_37] : memref<8x256xf32, #tpu.memory_space<vmem>>, vector<8x256xf32>
    tpu.vector_store %arg14[%c0_36, %c0_37], %47 {strides = array<i32>} : memref<8x256xf32, #tpu.memory_space<vmem>>, vector<8x256xf32>,
    return
  }
  func.func @transform_0(%arg0: i32) -> (i32, i32) {
    %c0_i32 = arith.constant 0 : i32
    %c0_i32_0 = arith.constant 0 : i32
    return %c0_i32, %arg0 : i32, i32
  }
  func.func @transform_1(%arg0: i32) -> (i32, i32) {
    %c0_i32 = arith.constant 0 : i32
    %c0_i32_0 = arith.constant 0 : i32
    %c0_i32_1 = arith.constant 0 : i32
    return %c0_i32, %c0_i32_0 : i32, i32
  }
  func.func @transform_2(%arg0: i32) -> (i32, i32) {
    %c0_i32 = arith.constant 0 : i32
    %c0_i32_0 = arith.constant 0 : i32
    %c0_i32_1 = arith.constant 0 : i32
    return %c0_i32, %c0_i32_0 : i32, i32
  }
  func.func @transform_3(%arg0: i32) -> (i32, i32) {
    %c0_i32 = arith.constant 0 : i32
    %c0_i32_0 = arith.constant 0 : i32
    %c0_i32_1 = arith.constant 0 : i32
    return %c0_i32, %c0_i32_0 : i32, i32
  }
  func.func @transform_4(%arg0: i32) -> (i32, i32) {
    %c0_i32 = arith.constant 0 : i32
    %c0_i32_0 = arith.constant 0 : i32
    %c0_i32_1 = arith.constant 0 : i32
    return %c0_i32, %c0_i32_0 : i32, i32
  }
  func.func @transform_5(%arg0: i32) -> (i32, i32) {
    %c0_i32 = arith.constant 0 : i32
    %c0_i32_0 = arith.constant 0 : i32
    %c0_i32_1 = arith.constant 0 : i32
    return %c0_i32, %c0_i32_0 : i32, i32
  }
  func.func @transform_6(%arg0: i32) -> (i32, i32) {
    %c0_i32 = arith.constant 0 : i32
    %c0_i32_0 = arith.constant 0 : i32
    %c0_i32_1 = arith.constant 0 : i32
    return %c0_i32, %c0_i32_0 : i32, i32
  }
  func.func @transform_7(%arg0: i32) -> (i32, i32) {
    %c0_i32 = arith.constant 0 : i32
    %c0_i32_0 = arith.constant 0 : i32
    %c0_i32_1 = arith.constant 0 : i32
    return %c0_i32, %c0_i32_0 : i32, i32
  }
  func.func @transform_8(%arg0: i32) -> (i32, i32) {
    %c0_i32 = arith.constant 0 : i32
    %c0_i32_0 = arith.constant 0 : i32
    %c0_i32_1 = arith.constant 0 : i32
    return %c0_i32, %c0_i32_0 : i32, i32
  }
  func.func @transform_9(%arg0: i32) -> (i32, i32) {
    %c0_i32 = arith.constant 0 : i32
    %c0_i32_0 = arith.constant 0 : i32
    %c0_i32_1 = arith.constant 0 : i32
    return %c0_i32, %c0_i32_0 : i32, i32
  }
  func.func @transform_10(%arg0: i32) -> (i32, i32) {
    %c0_i32 = arith.constant 0 : i32
    %c0_i32_0 = arith.constant 0 : i32
    %c0_i32_1 = arith.constant 0 : i32
    return %c0_i32, %c0_i32_0 : i32, i32
  }
  func.func @transform_11(%arg0: i32) -> (i32, i32) {
    %c0_i32 = arith.constant 0 : i32
    %c0_i32_0 = arith.constant 0 : i32
    %c0_i32_1 = arith.constant 0 : i32
    return %c0_i32, %c0_i32_0 : i32, i32
  }
  func.func @transform_12(%arg0: i32) -> (i32, i32) {
    %c0_i32 = arith.constant 0 : i32
    %c0_i32_0 = arith.constant 0 : i32
    %c0_i32_1 = arith.constant 0 : i32
    return %c0_i32, %c0_i32_0 : i32, i32
  }
  func.func @transform_13(%arg0: i32) -> (i32, i32) {
    %c0_i32 = arith.constant 0 : i32
    %c0_i32_0 = arith.constant 0 : i32
    return %c0_i32, %arg0 : i32, i32
  }
}

</mosaic_0001>

<llo_original>
// kernel: tpu_custom_call.1
$region0: #{tpu_custom_call.1}
  #allocation0 [shape = 'u32[]', space=smem, size = 0x4, offset = 0x4, fixed_abs, tag = 'smem constant byte address 0x4 - core index']
  #allocation1 [shape = 'u32[144,128]{1,0:T(1,128)}', space=vmem, size = 0x12000, scoped, tag = 'internal scratch']
  %s0 = inlined_call_operand.vmem [shape: f32[16,512], index: 0, kind: input, shape index: {}]
  %s1 = inlined_call_operand.vmem [shape: f32[256,16], index: 1, kind: input, shape index: {}]
  %s2 = inlined_call_operand.vmem [shape: f32[256,1], index: 2, kind: input, shape index: {}]
  %s3 = inlined_call_operand.vmem [shape: f32[128,256], index: 3, kind: input, shape index: {}]
  %s4 = inlined_call_operand.vmem [shape: f32[128,1], index: 4, kind: input, shape index: {}]
  %s5 = inlined_call_operand.vmem [shape: f32[64,128], index: 5, kind: input, shape index: {}]
  %s6 = inlined_call_operand.vmem [shape: f32[64,1], index: 6, kind: input, shape index: {}]
  %s7 = inlined_call_operand.vmem [shape: f32[32,64], index: 7, kind: input, shape index: {}]
  %s8 = inlined_call_operand.vmem [shape: f32[32,1], index: 8, kind: input, shape index: {}]
  %s9 = inlined_call_operand.vmem [shape: f32[16,32], index: 9, kind: input, shape index: {}]
  %s10 = inlined_call_operand.vmem [shape: f32[16,1], index: 10, kind: input, shape index: {}]
  %s11 = inlined_call_operand.vmem [shape: f32[8,16], index: 11, kind: input, shape index: {}]
  %s12 = inlined_call_operand.vmem [shape: f32[8,1], index: 12, kind: input, shape index: {}]
  %s13 = inlined_call_operand.hbm [shape: f32[8,512], index: 13, kind: output, shape index: {}]
  %s14 = sld [smem:[#allocation0]]
  $region108: #{tpu_custom_call.1} parent=0
    _
  %s16 = ssub.s32 1, %s14
  %s17 = scalar_select 0, %s16, %s14
  $region1: #{tpu_custom_call.1} parent=0
    #allocation2 [shape = 'u8[32768]{0}', space=vmem, size = 0x8000, scoped, tag = 'input window, operand 0']
    #allocation3 [shape = 'u8[16384]{0}', space=vmem, size = 0x4000, scoped, tag = 'output window, operand 0']
    #allocation4 [shape = 's32[2]{0}', space=sflag, size = 0x8, scoped, tag = 'scoped memory for tpu_custom_call.1']
    %18 = vsyncpa [#allocation4], 0
    %s19 = scalar_lea.sflag [#allocation4], 1
    %20 = vsyncpa %s19, 0
    loop: start=0, step=1, limit=4
    $region2: #{tpu_custom_call.1} parent=1 // loop_pre_header
      _
    $region3: #{tpu_custom_call.1} parent=1 // loop_header
      %s22 = sphi 0, %s26
      %p23 = scmp.ge.s32.totalorder %s22, 4
      %s32 = sphi 0, %s34
      %s35 = sphi 0, %s32
      %s36 = sphi 0, %s35
      %s52 = sphi 0, %s36
      %s56 = sphi 0, %s56
      %s58 = sphi 0, %s56
      %s59 = sphi 0, %s58
      %s73 = sphi 0, %s59
      %s77 = sphi 0, %s77
      %s79 = sphi 0, %s77
      %s80 = sphi 0, %s79
      %s94 = sphi 0, %s80
      %s98 = sphi 0, %s98
      %s100 = sphi 0, %s98
      %s101 = sphi 0, %s100
      %s115 = sphi 0, %s101
      %s119 = sphi 0, %s119
      %s121 = sphi 0, %s119
      %s122 = sphi 0, %s121
      %s136 = sphi 0, %s122
      %s140 = sphi 0, %s140
      %s142 = sphi 0, %s140
      %s143 = sphi 0, %s142
      %s157 = sphi 0, %s143
      %s161 = sphi 0, %s161
      %s163 = sphi 0, %s161
      %s164 = sphi 0, %s163
      %s178 = sphi 0, %s164
      %s182 = sphi 0, %s182
      %s184 = sphi 0, %s182
      %s185 = sphi 0, %s184
      %s199 = sphi 0, %s185
      %s203 = sphi 0, %s203
      %s205 = sphi 0, %s203
      %s206 = sphi 0, %s205
      %s220 = sphi 0, %s206
      %s224 = sphi 0, %s224
      %s226 = sphi 0, %s224
      %s227 = sphi 0, %s226
      %s241 = sphi 0, %s227
      %s245 = sphi 0, %s245
      %s247 = sphi 0, %s245
      %s248 = sphi 0, %s247
      %s262 = sphi 0, %s248
      %s266 = sphi 0, %s266
      %s268 = sphi 0, %s266
      %s269 = sphi 0, %s268
      %s283 = sphi 0, %s269
      %s287 = sphi 0, %s287
      %s289 = sphi 0, %s287
      %s290 = sphi 0, %s289
      %s304 = sphi 0, %s290
      %s310 = sphi 0, %s312
      %s313 = sphi 0, %s310
      %s314 = sphi 0, %s313
      %s330 = sphi 0, %s314
    $region4: #{tpu_custom_call.1} parent=1 // loop_header_branch
      %25 = sbr.rel (%p23) target = $region8
    $region5: #{tpu_custom_call.1} parent=1 // loop_body
      %s27 = ssub.s32 %s22, 1
      %s28 = ssub.s32 %s22, 2
      %s29 = sadd.s32 %s22, 1
      %s30 = ssub.s32 %s22, %s29
      %p31 = scmp.eq.s32.totalorder %s30, 0
      %s33 = sadd.s32 %s32, 1
      %s34 = scalar_select %p31, %s32, %s33
      %p37 = pneg %p31
      %p38 = scmp.eq.s32.totalorder %s22, 1
      %p39 = por %p37, %p38
      %p40 = scmp.ne.s32.totalorder %s32, %s35
      %p41 = scmp.eq.s32.totalorder %s22, 0
      %p42 = por %p40, %p41
      %p43 = scmp.ne.s32.totalorder %s32, %s35
      %p44 = scmp.eq.s32.totalorder %s27, 1
      %p45 = por %p43, %p44
      %p46 = scmp.ne.s32.totalorder %s35, %s36
      %p47 = scmp.eq.s32.totalorder %s27, 0
      %p48 = por %p46, %p47
      %p49 = scmp.ne.s32.totalorder %s35, %s36
      %p50 = scmp.eq.s32.totalorder %s28, 1
      %p51 = por %p49, %p50
      %p53 = scmp.ne.s32.totalorder %s36, %s52
      %p54 = scmp.eq.s32.totalorder %s28, 0
      %p55 = por %p53, %p54
      %s57 = sadd.s32 %s56, 1
      %p60 = scmp.eq.s32.totalorder %s22, 1
      %p61 = scmp.ne.s32.totalorder %s56, %s58
      %p62 = scmp.eq.s32.totalorder %s22, 0
      %p63 = por %p61, %p62
      %p64 = scmp.ne.s32.totalorder %s56, %s58
      %p65 = scmp.eq.s32.totalorder %s27, 1
      %p66 = por %p64, %p65
      %p67 = scmp.ne.s32.totalorder %s58, %s59
      %p68 = scmp.eq.s32.totalorder %s27, 0
      %p69 = por %p67, %p68
      %p70 = scmp.ne.s32.totalorder %s58, %s59
      %p71 = scmp.eq.s32.totalorder %s28, 1
      %p72 = por %p70, %p71
      %p74 = scmp.ne.s32.totalorder %s59, %s73
      %p75 = scmp.eq.s32.totalorder %s28, 0
      %p76 = por %p74, %p75
      %s78 = sadd.s32 %s77, 1
      %p81 = scmp.eq.s32.totalorder %s22, 1
      %p82 = scmp.ne.s32.totalorder %s77, %s79
      %p83 = scmp.eq.s32.totalorder %s22, 0
      %p84 = por %p82, %p83
      %p85 = scmp.ne.s32.totalorder %s77, %s79
      %p86 = scmp.eq.s32.totalorder %s27, 1
      %p87 = por %p85, %p86
      %p88 = scmp.ne.s32.totalorder %s79, %s80
      %p89 = scmp.eq.s32.totalorder %s27, 0
      %p90 = por %p88, %p89
      %p91 = scmp.ne.s32.totalorder %s79, %s80
      %p92 = scmp.eq.s32.totalorder %s28, 1
      %p93 = por %p91, %p92
      %p95 = scmp.ne.s32.totalorder %s80, %s94
      %p96 = scmp.eq.s32.totalorder %s28, 0
      %p97 = por %p95, %p96
      %s99 = sadd.s32 %s98, 1
      %p102 = scmp.eq.s32.totalorder %s22, 1
      %p103 = scmp.ne.s32.totalorder %s98, %s100
      %p104 = scmp.eq.s32.totalorder %s22, 0
      %p105 = por %p103, %p104
      %p106 = scmp.ne.s32.totalorder %s98, %s100
      %p107 = scmp.eq.s32.totalorder %s27, 1
      %p108 = por %p106, %p107
      %p109 = scmp.ne.s32.totalorder %s100, %s101
      %p110 = scmp.eq.s32.totalorder %s27, 0
      %p111 = por %p109, %p110
      %p112 = scmp.ne.s32.totalorder %s100, %s101
      %p113 = scmp.eq.s32.totalorder %s28, 1
      %p114 = por %p112, %p113
      %p116 = scmp.ne.s32.totalorder %s101, %s115
      %p117 = scmp.eq.s32.totalorder %s28, 0
      %p118 = por %p116, %p117
      %s120 = sadd.s32 %s119, 1
      %p123 = scmp.eq.s32.totalorder %s22, 1
      %p124 = scmp.ne.s32.totalorder %s119, %s121
      %p125 = scmp.eq.s32.totalorder %s22, 0
      %p126 = por %p124, %p125
      %p127 = scmp.ne.s32.totalorder %s119, %s121
      %p128 = scmp.eq.s32.totalorder %s27, 1
      %p129 = por %p127, %p128
      %p130 = scmp.ne.s32.totalorder %s121, %s122
      %p131 = scmp.eq.s32.totalorder %s27, 0
      %p132 = por %p130, %p131
      %p133 = scmp.ne.s32.totalorder %s121, %s122
      %p134 = scmp.eq.s32.totalorder %s28, 1
      %p135 = por %p133, %p134
      %p137 = scmp.ne.s32.totalorder %s122, %s136
      %p138 = scmp.eq.s32.totalorder %s28, 0
      %p139 = por %p137, %p138
      %s141 = sadd.s32 %s140, 1
      %p144 = scmp.eq.s32.totalorder %s22, 1
      %p145 = scmp.ne.s32.totalorder %s140, %s142
      %p146 = scmp.eq.s32.totalorder %s22, 0
      %p147 = por %p145, %p146
      %p148 = scmp.ne.s32.totalorder %s140, %s142
      %p149 = scmp.eq.s32.totalorder %s27, 1
      %p150 = por %p148, %p149
      %p151 = scmp.ne.s32.totalorder %s142, %s143
      %p152 = scmp.eq.s32.totalorder %s27, 0
      %p153 = por %p151, %p152
      %p154 = scmp.ne.s32.totalorder %s142, %s143
      %p155 = scmp.eq.s32.totalorder %s28, 1
      %p156 = por %p154, %p155
      %p158 = scmp.ne.s32.totalorder %s143, %s157
      %p159 = scmp.eq.s32.totalorder %s28, 0
      %p160 = por %p158, %p159
      %s162 = sadd.s32 %s161, 1
      %p165 = scmp.eq.s32.totalorder %s22, 1
      %p166 = scmp.ne.s32.totalorder %s161, %s163
      %p167 = scmp.eq.s32.totalorder %s22, 0
      %p168 = por %p166, %p167
      %p169 = scmp.ne.s32.totalorder %s161, %s163
      %p170 = scmp.eq.s32.totalorder %s27, 1
      %p171 = por %p169, %p170
      %p172 = scmp.ne.s32.totalorder %s163, %s164
      %p173 = scmp.eq.s32.totalorder %s27, 0
      %p174 = por %p172, %p173
      %p175 = scmp.ne.s32.totalorder %s163, %s164
      %p176 = scmp.eq.s32.totalorder %s28, 1
      %p177 = por %p175, %p176
      %p179 = scmp.ne.s32.totalorder %s164, %s178
      %p180 = scmp.eq.s32.totalorder %s28, 0
      %p181 = por %p179, %p180
      %s183 = sadd.s32 %s182, 1
      %p186 = scmp.eq.s32.totalorder %s22, 1
      %p187 = scmp.ne.s32.totalorder %s182, %s184
      %p188 = scmp.eq.s32.totalorder %s22, 0
      %p189 = por %p187, %p188
      %p190 = scmp.ne.s32.totalorder %s182, %s184
      %p191 = scmp.eq.s32.totalorder %s27, 1
      %p192 = por %p190, %p191
      %p193 = scmp.ne.s32.totalorder %s184, %s185
      %p194 = scmp.eq.s32.totalorder %s27, 0
      %p195 = por %p193, %p194
      %p196 = scmp.ne.s32.totalorder %s184, %s185
      %p197 = scmp.eq.s32.totalorder %s28, 1
      %p198 = por %p196, %p197
      %p200 = scmp.ne.s32.totalorder %s185, %s199
      %p201 = scmp.eq.s32.totalorder %s28, 0
      %p202 = por %p200, %p201
      %s204 = sadd.s32 %s203, 1
      %p207 = scmp.eq.s32.totalorder %s22, 1
      %p208 = scmp.ne.s32.totalorder %s203, %s205
      %p209 = scmp.eq.s32.totalorder %s22, 0
      %p210 = por %p208, %p209
      %p211 = scmp.ne.s32.totalorder %s203, %s205
      %p212 = scmp.eq.s32.totalorder %s27, 1
      %p213 = por %p211, %p212
      %p214 = scmp.ne.s32.totalorder %s205, %s206
      %p215 = scmp.eq.s32.totalorder %s27, 0
      %p216 = por %p214, %p215
      %p217 = scmp.ne.s32.totalorder %s205, %s206
      %p218 = scmp.eq.s32.totalorder %s28, 1
      %p219 = por %p217, %p218
      %p221 = scmp.ne.s32.totalorder %s206, %s220
      %p222 = scmp.eq.s32.totalorder %s28, 0
      %p223 = por %p221, %p222
      %s225 = sadd.s32 %s224, 1
      %p228 = scmp.eq.s32.totalorder %s22, 1
      %p229 = scmp.ne.s32.totalorder %s224, %s226
      %p230 = scmp.eq.s32.totalorder %s22, 0
      %p231 = por %p229, %p230
      %p232 = scmp.ne.s32.totalorder %s224, %s226
      %p233 = scmp.eq.s32.totalorder %s27, 1
      %p234 = por %p232, %p233
      %p235 = scmp.ne.s32.totalorder %s226, %s227
      %p236 = scmp.eq.s32.totalorder %s27, 0
      %p237 = por %p235, %p236
      %p238 = scmp.ne.s32.totalorder %s226, %s227
      %p239 = scmp.eq.s32.totalorder %s28, 1
      %p240 = por %p238, %p239
      %p242 = scmp.ne.s32.totalorder %s227, %s241
      %p243 = scmp.eq.s32.totalorder %s28, 0
      %p244 = por %p242, %p243
      %s246 = sadd.s32 %s245, 1
      %p249 = scmp.eq.s32.totalorder %s22, 1
      %p250 = scmp.ne.s32.totalorder %s245, %s247
      %p251 = scmp.eq.s32.totalorder %s22, 0
      %p252 = por %p250, %p251
      %p253 = scmp.ne.s32.totalorder %s245, %s247
      %p254 = scmp.eq.s32.totalorder %s27, 1
      %p255 = por %p253, %p254
      %p256 = scmp.ne.s32.totalorder %s247, %s248
      %p257 = scmp.eq.s32.totalorder %s27, 0
      %p258 = por %p256, %p257
      %p259 = scmp.ne.s32.totalorder %s247, %s248
      %p260 = scmp.eq.s32.totalorder %s28, 1
      %p261 = por %p259, %p260
      %p263 = scmp.ne.s32.totalorder %s248, %s262
      %p264 = scmp.eq.s32.totalorder %s28, 0
      %p265 = por %p263, %p264
      %s267 = sadd.s32 %s266, 1
      %p270 = scmp.eq.s32.totalorder %s22, 1
      %p271 = scmp.ne.s32.totalorder %s266, %s268
      %p272 = scmp.eq.s32.totalorder %s22, 0
      %p273 = por %p271, %p272
      %p274 = scmp.ne.s32.totalorder %s266, %s268
      %p275 = scmp.eq.s32.totalorder %s27, 1
      %p276 = por %p274, %p275
      %p277 = scmp.ne.s32.totalorder %s268, %s269
      %p278 = scmp.eq.s32.totalorder %s27, 0
      %p279 = por %p277, %p278
      %p280 = scmp.ne.s32.totalorder %s268, %s269
      %p281 = scmp.eq.s32.totalorder %s28, 1
      %p282 = por %p280, %p281
      %p284 = scmp.ne.s32.totalorder %s269, %s283
      %p285 = scmp.eq.s32.totalorder %s28, 0
      %p286 = por %p284, %p285
      %s288 = sadd.s32 %s287, 1
      %p291 = scmp.eq.s32.totalorder %s22, 1
      %p292 = scmp.ne.s32.totalorder %s287, %s289
      %p293 = scmp.eq.s32.totalorder %s22, 0
      %p294 = por %p292, %p293
      %p295 = scmp.ne.s32.totalorder %s287, %s289
      %p296 = scmp.eq.s32.totalorder %s27, 1
      %p297 = por %p295, %p296
      %p298 = scmp.ne.s32.totalorder %s289, %s290
      %p299 = scmp.eq.s32.totalorder %s27, 0
      %p300 = por %p298, %p299
      %p301 = scmp.ne.s32.totalorder %s289, %s290
      %p302 = scmp.eq.s32.totalorder %s28, 1
      %p303 = por %p301, %p302
      %p305 = scmp.ne.s32.totalorder %s290, %s304
      %p306 = scmp.eq.s32.totalorder %s28, 0
      %p307 = por %p305, %p306
      %s308 = ssub.s32 %s22, %s29
      %p309 = scmp.eq.s32.totalorder %s308, 0
      %s311 = sadd.s32 %s310, 1
      %s312 = scalar_select %p309, %s310, %s311
      %p315 = pneg %p309
      %p316 = scmp.eq.s32.totalorder %s22, 1
      %p317 = por %p315, %p316
      %p318 = scmp.ne.s32.totalorder %s310, %s313
      %p319 = scmp.eq.s32.totalorder %s22, 0
      %p320 = por %p318, %p319
      %p321 = scmp.ne.s32.totalorder %s310, %s313
      %p322 = scmp.eq.s32.totalorder %s27, 1
      %p323 = por %p321, %p322
      %p324 = scmp.ne.s32.totalorder %s313, %s314
      %p325 = scmp.eq.s32.totalorder %s27, 0
      %p326 = por %p324, %p325
      %p327 = scmp.ne.s32.totalorder %s313, %s314
      %p328 = scmp.eq.s32.totalorder %s28, 1
      %p329 = por %p327, %p328
      %p331 = scmp.ne.s32.totalorder %s314, %s330
      %p332 = scmp.eq.s32.totalorder %s28, 0
      %p333 = por %p331, %p332
      %p334 = scmp.le.s32.totalorder 1, %s22
      %p335 = scmp.lt.s32.totalorder %s22, 3
      %p336 = pnand %p334, %p335
      %p337 = pneg %p336
      // Predicated region
      $region9: #{tpu_custom_call.1} parent=5 // pred_check
        _
      $region10: #{tpu_custom_call.1} parent=5 // pred_check_branch
        %339 = sbr.rel (%p336) target = $region12
      $region11: #{tpu_custom_call.1} parent=5 // pred_region
        %s340 = ssub.s32 %s22, 1
        // Predicated region
        $region13: #{tpu_custom_call.1} parent=11 // pred_check
          %p341 = pneg %p69
        $region14: #{tpu_custom_call.1} parent=11 // pred_check_branch
          %343 = sbr.rel (%p341) target = $region16
        $region15: #{tpu_custom_call.1} parent=11 // pred_region
          _
        $region16: #{tpu_custom_call.1} parent=11 // pred_fallthru
          _
        // Predicated region
        $region17: #{tpu_custom_call.1} parent=11 // pred_check
          %p344 = pneg %p90
        $region18: #{tpu_custom_call.1} parent=11 // pred_check_branch
          %346 = sbr.rel (%p344) target = $region20
        $region19: #{tpu_custom_call.1} parent=11 // pred_region
          _
        $region20: #{tpu_custom_call.1} parent=11 // pred_fallthru
          _
        // Predicated region
        $region21: #{tpu_custom_call.1} parent=11 // pred_check
          %p347 = pneg %p111
        $region22: #{tpu_custom_call.1} parent=11 // pred_check_branch
          %349 = sbr.rel (%p347) target = $region24
        $region23: #{tpu_custom_call.1} parent=11 // pred_region
          _
        $region24: #{tpu_custom_call.1} parent=11 // pred_fallthru
          _
        // Predicated region
        $region25: #{tpu_custom_call.1} parent=11 // pred_check
          %p350 = pneg %p132
        $region26: #{tpu_custom_call.1} parent=11 // pred_check_branch
          %352 = sbr.rel (%p350) target = $region28
        $region27: #{tpu_custom_call.1} parent=11 // pred_region
          _
        $region28: #{tpu_custom_call.1} parent=11 // pred_fallthru
          _
        // Predicated region
        $region29: #{tpu_custom_call.1} parent=11 // pred_check
          %p353 = pneg %p153
        $region30: #{tpu_custom_call.1} parent=11 // pred_check_branch
          %355 = sbr.rel (%p353) target = $region32
        $region31: #{tpu_custom_call.1} parent=11 // pred_region
          _
        $region32: #{tpu_custom_call.1} parent=11 // pred_fallthru
          _
        // Predicated region
        $region33: #{tpu_custom_call.1} parent=11 // pred_check
          %p356 = pneg %p174
        $region34: #{tpu_custom_call.1} parent=11 // pred_check_branch
          %358 = sbr.rel (%p356) target = $region36
        $region35: #{tpu_custom_call.1} parent=11 // pred_region
          _
        $region36: #{tpu_custom_call.1} parent=11 // pred_fallthru
          _
        // Predicated region
        $region37: #{tpu_custom_call.1} parent=11 // pred_check
          %p359 = pneg %p195
        $region38: #{tpu_custom_call.1} parent=11 // pred_check_branch
          %361 = sbr.rel (%p359) target = $region40
        $region39: #{tpu_custom_call.1} parent=11 // pred_region
          _
        $region40: #{tpu_custom_call.1} parent=11 // pred_fallthru
          _
        // Predicated region
        $region41: #{tpu_custom_call.1} parent=11 // pred_check
          %p362 = pneg %p216
        $region42: #{tpu_custom_call.1} parent=11 // pred_check_branch
          %364 = sbr.rel (%p362) target = $region44
        $region43: #{tpu_custom_call.1} parent=11 // pred_region
          _
        $region44: #{tpu_custom_call.1} parent=11 // pred_fallthru
          _
        // Predicated region
        $region45: #{tpu_custom_call.1} parent=11 // pred_check
          %p365 = pneg %p237
        $region46: #{tpu_custom_call.1} parent=11 // pred_check_branch
          %367 = sbr.rel (%p365) target = $region48
        $region47: #{tpu_custom_call.1} parent=11 // pred_region
          _
        $region48: #{tpu_custom_call.1} parent=11 // pred_fallthru
          _
        // Predicated region
        $region49: #{tpu_custom_call.1} parent=11 // pred_check
          %p368 = pneg %p258
        $region50: #{tpu_custom_call.1} parent=11 // pred_check_branch
          %370 = sbr.rel (%p368) target = $region52
        $region51: #{tpu_custom_call.1} parent=11 // pred_region
          _
        $region52: #{tpu_custom_call.1} parent=11 // pred_fallthru
          _
        // Predicated region
        $region53: #{tpu_custom_call.1} parent=11 // pred_check
          %p371 = pneg %p279
        $region54: #{tpu_custom_call.1} parent=11 // pred_check_branch
          %373 = sbr.rel (%p371) target = $region56
        $region55: #{tpu_custom_call.1} parent=11 // pred_region
          _
        $region56: #{tpu_custom_call.1} parent=11 // pred_fallthru
          _
        // Predicated region
        $region57: #{tpu_custom_call.1} parent=11 // pred_check
          %p374 = pneg %p300
        $region58: #{tpu_custom_call.1} parent=11 // pred_check_branch
          %376 = sbr.rel (%p374) target = $region60
        $region59: #{tpu_custom_call.1} parent=11 // pred_region
          _
        $region60: #{tpu_custom_call.1} parent=11 // pred_fallthru
          _
      $region12: #{tpu_custom_call.1} parent=5 // pred_fallthru
        _
      %p377 = scmp.lt.s32.totalorder %s22, 2
      // Predicated region
      $region61: #{tpu_custom_call.1} parent=5 // pred_check
        %p378 = pneg %p377
      $region62: #{tpu_custom_call.1} parent=5 // pred_check_branch
        %380 = sbr.rel (%p378) target = $region64
      $region63: #{tpu_custom_call.1} parent=5 // pred_region
        // Predicated region
        $region65: #{tpu_custom_call.1} parent=63 // pred_check
          %p381 = pneg %p42
        $region66: #{tpu_custom_call.1} parent=63 // pred_check_branch
          %383 = sbr.rel (%p381) target = $region68
        $region67: #{tpu_custom_call.1} parent=63 // pred_region
          %s384 = sand.u32 %s32, 1
          %s385 = sand.u32 %s32, 1
          %s386 = smul.addr %s385, 32
          %s387 = scalar_lea.vmem [#allocation2], %s386
          %s388 = smul.u32 2, %s22
          %s389 = smul.addr %s388, 8
          %s390 = scalar_lea.vmem %s0, %s389
          // Predicated region
          $region69: #{tpu_custom_call.1} parent=67 // pred_check
            _
          $region70: #{tpu_custom_call.1} parent=67 // pred_check_branch
            %392 = sbr.rel (0) target = $region72
          $region71: #{tpu_custom_call.1} parent=67 // pred_region
            // Predicated region
            $region73: #{tpu_custom_call.1} parent=71 // pred_check
              _
            $region74: #{tpu_custom_call.1} parent=71 // pred_check_branch
              %394 = sbr.rel (0) target = $region76
            $region75: #{tpu_custom_call.1} parent=71 // pred_region
              loop: start=0, step=1, limit=1
              $region77: #{tpu_custom_call.1} parent=75 // loop_pre_header
                _
              $region78: #{tpu_custom_call.1} parent=75 // loop_header
                %s396 = sphi 0, %s400
                %p397 = scmp.ge.s32.totalorder %s396, 1
                %s401 = sphi %s390, %s390
                %s402 = sphi %s387, %s387
              $region79: #{tpu_custom_call.1} parent=75 // loop_header_branch
                %399 = sbr.rel (%p397) target = $region83
              $region80: #{tpu_custom_call.1} parent=75 // loop_body
                %v403 = vld [vmem:[%s401] sm:$0xff]
                %404 = vst [vmem:[%s402] sm:$0xff] %v403
                %v405 = vld [vmem:[%s401 + $0x8] sm:$0xff]
                %406 = vst [vmem:[%s402 + $0x8] sm:$0xff] %v405
                %v407 = vld [vmem:[%s401 + $0x20] sm:$0xff]
                %408 = vst [vmem:[%s402 + $0x10] sm:$0xff] %v407
                %v409 = vld [vmem:[%s401 + $0x28] sm:$0xff]
                %410 = vst [vmem:[%s402 + $0x18] sm:$0xff] %v409
              $region81: #{tpu_custom_call.1} parent=75 // loop_footer
                %s400 = sadd.s32 1, %s396
              $region82: #{tpu_custom_call.1} parent=75 // loop_footer_branch
                %395 = sbr.rel target = $region78
              $region83: #{tpu_custom_call.1} parent=75 // loop_exit
                _
            $region76: #{tpu_custom_call.1} parent=71 // pred_fallthru
              _
            // Predicated region
            $region84: #{tpu_custom_call.1} parent=71 // pred_check
              _
            $region85: #{tpu_custom_call.1} parent=71 // pred_check_branch
              %412 = sbr.rel target = $region87
            $region86: #{tpu_custom_call.1} parent=71 // pred_region
              _
            $region87: #{tpu_custom_call.1} parent=71 // pred_fallthru
              _
          $region72: #{tpu_custom_call.1} parent=67 // pred_fallthru
            _
          %413 = vnop
        $region68: #{tpu_custom_call.1} parent=63 // pred_fallthru
          _
      $region64: #{tpu_custom_call.1} parent=5 // pred_fallthru
        _
      %p414 = scmp.le.s32.totalorder 1, %s22
      %p415 = scmp.lt.s32.totalorder %s22, 3
      %p416 = pnand %p414, %p415
      %p417 = pneg %p416
      // Predicated region
      $region88: #{tpu_custom_call.1} parent=5 // pred_check
        _
      $region89: #{tpu_custom_call.1} parent=5 // pred_check_branch
        %419 = sbr.rel (%p416) target = $region91
      $region90: #{tpu_custom_call.1} parent=5 // pred_region
        %s420 = ssub.s32 %s22, 1
        %s421 = sand.u32 %s35, 1
        %s422 = sand.u32 %s35, 1
        %s423 = smul.addr %s422, 32
        %s424 = scalar_lea.vmem [#allocation2], %s423
        // Predicated region
        $region92: #{tpu_custom_call.1} parent=90 // pred_check
          %p425 = pneg %p48
        $region93: #{tpu_custom_call.1} parent=90 // pred_check_branch
          %427 = sbr.rel (%p425) target = $region95
        $region94: #{tpu_custom_call.1} parent=90 // pred_region
          _
        $region95: #{tpu_custom_call.1} parent=90 // pred_fallthru
          _
        %s428 = sand.u32 %s35, 1
        %s429 = sand.u32 %s35, 1
        %s430 = smul.addr %s429, 32
        %s431 = scalar_lea.vmem [#allocation2], %s430
        %p432 = pneg %p48
        %p433 = pneg %p45
        %p434 = pneg %p69
        %p435 = pneg %p66
        %p436 = pneg %p90
        %p437 = pneg %p87
        %p438 = pneg %p111
        %p439 = pneg %p108
        %p440 = pneg %p132
        %p441 = pneg %p129
        %p442 = pneg %p153
        %p443 = pneg %p150
        %p444 = pneg %p174
        %p445 = pneg %p171
        %p446 = pneg %p195
        %p447 = pneg %p192
        %p448 = pneg %p216
        %p449 = pneg %p213
        %p450 = pneg %p237
        %p451 = pneg %p234
        %p452 = pneg %p258
        %p453 = pneg %p255
        %p454 = pneg %p279
        %p455 = pneg %p276
        %p456 = pneg %p300
        %p457 = pneg %p297
        %p458 = pneg %p326
        %p459 = pneg %p323
        %s460 = sand.u32 %s313, 1
        %s461 = scalar_lea.sflag [#allocation4], %s460
        %s462 = sand.u32 %s313, 1
        %s463 = smul.addr %s462, 16
        %s464 = scalar_lea.vmem [#allocation3], %s463
        %s465 = smul.u32 2, %s27
        %s466 = smul.u32 2, %s27
        %v467 = vld [vmem:[%s424] sm:$0xff]
        %v468 = vld [vmem:[%s424 + $0x8] sm:$0xff]
        %v469 = vld [vmem:[%s424 + $0x10] sm:$0xff]
        %v470 = vld [vmem:[%s424 + $0x18] sm:$0xff]
        %v471 = vld [vmem:[%s1] sm:$0xff]
        %v472 = vld [vmem:[%s1 + $0x8] sm:$0xff]
        %v473 = vld [vmem:[%s1 + $0x10] sm:$0xff]
        %v474 = vld [vmem:[%s1 + $0x18] sm:$0xff]
        %v475 = vld [vmem:[%s1 + $0x20] sm:$0xff]
        %v476 = vld [vmem:[%s1 + $0x28] sm:$0xff]
        %v477 = vld [vmem:[%s1 + $0x30] sm:$0xff]
        %v478 = vld [vmem:[%s1 + $0x38] sm:$0xff]
        %v479 = vld [vmem:[%s1 + $0x40] sm:$0xff]
        %v480 = vld [vmem:[%s1 + $0x48] sm:$0xff]
        %v481 = vld [vmem:[%s1 + $0x50] sm:$0xff]
        %v482 = vld [vmem:[%s1 + $0x58] sm:$0xff]
        %v483 = vld [vmem:[%s1 + $0x60] sm:$0xff]
        %v484 = vld [vmem:[%s1 + $0x68] sm:$0xff]
        %v485 = vld [vmem:[%s1 + $0x70] sm:$0xff]
        %v486 = vld [vmem:[%s1 + $0x78] sm:$0xff]
        %v487 = vld [vmem:[%s1 + $0x80] sm:$0xff]
        %v488 = vld [vmem:[%s1 + $0x88] sm:$0xff]
        %v489 = vld [vmem:[%s1 + $0x90] sm:$0xff]
        %v490 = vld [vmem:[%s1 + $0x98] sm:$0xff]
        %v491 = vld [vmem:[%s1 + $0xa0] sm:$0xff]
        %v492 = vld [vmem:[%s1 + $0xa8] sm:$0xff]
        %v493 = vld [vmem:[%s1 + $0xb0] sm:$0xff]
        %v494 = vld [vmem:[%s1 + $0xb8] sm:$0xff]
        %v495 = vld [vmem:[%s1 + $0xc0] sm:$0xff]
        %v496 = vld [vmem:[%s1 + $0xc8] sm:$0xff]
        %v497 = vld [vmem:[%s1 + $0xd0] sm:$0xff]
        %v498 = vld [vmem:[%s1 + $0xd8] sm:$0xff]
        %v499 = vld [vmem:[%s1 + $0xe0] sm:$0xff]
        %v500 = vld [vmem:[%s1 + $0xe8] sm:$0xff]
        %v501 = vld [vmem:[%s1 + $0xf0] sm:$0xff]
        %v502 = vld [vmem:[%s1 + $0xf8] sm:$0xff]
        %v503 = vld [vmem:[%s2] sm:$0xff]
        %v504 = vld [vmem:[%s2 + $0x8] sm:$0xff]
        %v505 = vld [vmem:[%s2 + $0x10] sm:$0xff]
        %v506 = vld [vmem:[%s2 + $0x18] sm:$0xff]
        %v507 = vld [vmem:[%s2 + $0x20] sm:$0xff]
        %v508 = vld [vmem:[%s2 + $0x28] sm:$0xff]
        %v509 = vld [vmem:[%s2 + $0x30] sm:$0xff]
        %v510 = vld [vmem:[%s2 + $0x38] sm:$0xff]
        %v511 = vld [vmem:[%s2 + $0x40] sm:$0xff]
        %v512 = vld [vmem:[%s2 + $0x48] sm:$0xff]
        %v513 = vld [vmem:[%s2 + $0x50] sm:$0xff]
        %v514 = vld [vmem:[%s2 + $0x58] sm:$0xff]
        %v515 = vld [vmem:[%s2 + $0x60] sm:$0xff]
        %v516 = vld [vmem:[%s2 + $0x68] sm:$0xff]
        %v517 = vld [vmem:[%s2 + $0x70] sm:$0xff]
        %v518 = vld [vmem:[%s2 + $0x78] sm:$0xff]
        %v519 = vld [vmem:[%s2 + $0x80] sm:$0xff]
        %v520 = vld [vmem:[%s2 + $0x88] sm:$0xff]
        %v521 = vld [vmem:[%s2 + $0x90] sm:$0xff]
        %v522 = vld [vmem:[%s2 + $0x98] sm:$0xff]
        %v523 = vld [vmem:[%s2 + $0xa0] sm:$0xff]
        %v524 = vld [vmem:[%s2 + $0xa8] sm:$0xff]
        %v525 = vld [vmem:[%s2 + $0xb0] sm:$0xff]
        %v526 = vld [vmem:[%s2 + $0xb8] sm:$0xff]
        %v527 = vld [vmem:[%s2 + $0xc0] sm:$0xff]
        %v528 = vld [vmem:[%s2 + $0xc8] sm:$0xff]
        %v529 = vld [vmem:[%s2 + $0xd0] sm:$0xff]
        %v530 = vld [vmem:[%s2 + $0xd8] sm:$0xff]
        %v531 = vld [vmem:[%s2 + $0xe0] sm:$0xff]
        %v532 = vld [vmem:[%s2 + $0xe8] sm:$0xff]
        %v533 = vld [vmem:[%s2 + $0xf0] sm:$0xff]
        %v534 = vld [vmem:[%s2 + $0xf8] sm:$0xff]
        %536 = vset.pattern.permute.xlu0 0
        %537 = vperm.xlu0 %536, %v503
        %v538 = vpop.permute.xlu0 %537
        %541 = vset.pattern.permute.xlu0 0
        %542 = vperm.xlu0 %541, %v504
        %v543 = vpop.permute.xlu0 %542
        %546 = vset.pattern.permute.xlu0 0
        %547 = vperm.xlu0 %546, %v505
        %v548 = vpop.permute.xlu0 %547
        %551 = vset.pattern.permute.xlu0 0
        %552 = vperm.xlu0 %551, %v506
        %v553 = vpop.permute.xlu0 %552
        %556 = vset.pattern.permute.xlu0 0
        %557 = vperm.xlu0 %556, %v507
        %v558 = vpop.permute.xlu0 %557
        %561 = vset.pattern.permute.xlu0 0
        %562 = vperm.xlu0 %561, %v508
        %v563 = vpop.permute.xlu0 %562
        %566 = vset.pattern.permute.xlu0 0
        %567 = vperm.xlu0 %566, %v509
        %v568 = vpop.permute.xlu0 %567
        %571 = vset.pattern.permute.xlu0 0
        %572 = vperm.xlu0 %571, %v510
        %v573 = vpop.permute.xlu0 %572
        %576 = vset.pattern.permute.xlu0 0
        %577 = vperm.xlu0 %576, %v511
        %v578 = vpop.permute.xlu0 %577
        %581 = vset.pattern.permute.xlu0 0
        %582 = vperm.xlu0 %581, %v512
        %v583 = vpop.permute.xlu0 %582
        %586 = vset.pattern.permute.xlu0 0
        %587 = vperm.xlu0 %586, %v513
        %v588 = vpop.permute.xlu0 %587
        %591 = vset.pattern.permute.xlu0 0
        %592 = vperm.xlu0 %591, %v514
        %v593 = vpop.permute.xlu0 %592
        %596 = vset.pattern.permute.xlu0 0
        %597 = vperm.xlu0 %596, %v515
        %v598 = vpop.permute.xlu0 %597
        %601 = vset.pattern.permute.xlu0 0
        %602 = vperm.xlu0 %601, %v516
        %v603 = vpop.permute.xlu0 %602
        %606 = vset.pattern.permute.xlu0 0
        %607 = vperm.xlu0 %606, %v517
        %v608 = vpop.permute.xlu0 %607
        %611 = vset.pattern.permute.xlu0 0
        %612 = vperm.xlu0 %611, %v518
        %v613 = vpop.permute.xlu0 %612
        %616 = vset.pattern.permute.xlu0 0
        %617 = vperm.xlu0 %616, %v519
        %v618 = vpop.permute.xlu0 %617
        %621 = vset.pattern.permute.xlu0 0
        %622 = vperm.xlu0 %621, %v520
        %v623 = vpop.permute.xlu0 %622
        %626 = vset.pattern.permute.xlu0 0
        %627 = vperm.xlu0 %626, %v521
        %v628 = vpop.permute.xlu0 %627
        %631 = vset.pattern.permute.xlu0 0
        %632 = vperm.xlu0 %631, %v522
        %v633 = vpop.permute.xlu0 %632
        %636 = vset.pattern.permute.xlu0 0
        %637 = vperm.xlu0 %636, %v523
        %v638 = vpop.permute.xlu0 %637
        %641 = vset.pattern.permute.xlu0 0
        %642 = vperm.xlu0 %641, %v524
        %v643 = vpop.permute.xlu0 %642
        %646 = vset.pattern.permute.xlu0 0
        %647 = vperm.xlu0 %646, %v525
        %v648 = vpop.permute.xlu0 %647
        %651 = vset.pattern.permute.xlu0 0
        %652 = vperm.xlu0 %651, %v526
        %v653 = vpop.permute.xlu0 %652
        %656 = vset.pattern.permute.xlu0 0
        %657 = vperm.xlu0 %656, %v527
        %v658 = vpop.permute.xlu0 %657
        %661 = vset.pattern.permute.xlu0 0
        %662 = vperm.xlu0 %661, %v528
        %v663 = vpop.permute.xlu0 %662
        %666 = vset.pattern.permute.xlu0 0
        %667 = vperm.xlu0 %666, %v529
        %v668 = vpop.permute.xlu0 %667
        %671 = vset.pattern.permute.xlu0 0
        %672 = vperm.xlu0 %671, %v530
        %v673 = vpop.permute.xlu0 %672
        %676 = vset.pattern.permute.xlu0 0
        %677 = vperm.xlu0 %676, %v531
        %v678 = vpop.permute.xlu0 %677
        %681 = vset.pattern.permute.xlu0 0
        %682 = vperm.xlu0 %681, %v532
        %v683 = vpop.permute.xlu0 %682
        %686 = vset.pattern.permute.xlu0 0
        %687 = vperm.xlu0 %686, %v533
        %v688 = vpop.permute.xlu0 %687
        %691 = vset.pattern.permute.xlu0 0
        %692 = vperm.xlu0 %691, %v534
        %v693 = vpop.permute.xlu0 %692
        %vm695 = vcmask 130048
        %v697 = vsel %vm695, %v471, 0
        %v700 = vsel %vm695, %v472, 0
        %v703 = vsel %vm695, %v473, 0
        %v706 = vsel %vm695, %v474, 0
        %v709 = vsel %vm695, %v475, 0
        %v712 = vsel %vm695, %v476, 0
        %v715 = vsel %vm695, %v477, 0
        %v718 = vsel %vm695, %v478, 0
        %v721 = vsel %vm695, %v479, 0
        %v724 = vsel %vm695, %v480, 0
        %v727 = vsel %vm695, %v481, 0
        %v730 = vsel %vm695, %v482, 0
        %v733 = vsel %vm695, %v483, 0
        %v736 = vsel %vm695, %v484, 0
        %v739 = vsel %vm695, %v485, 0
        %v742 = vsel %vm695, %v486, 0
        %v745 = vsel %vm695, %v487, 0
        %v748 = vsel %vm695, %v488, 0
        %v751 = vsel %vm695, %v489, 0
        %v754 = vsel %vm695, %v490, 0
        %v757 = vsel %vm695, %v491, 0
        %v760 = vsel %vm695, %v492, 0
        %v763 = vsel %vm695, %v493, 0
        %v766 = vsel %vm695, %v494, 0
        %v769 = vsel %vm695, %v495, 0
        %v772 = vsel %vm695, %v496, 0
        %v775 = vsel %vm695, %v497, 0
        %v778 = vsel %vm695, %v498, 0
        %v781 = vsel %vm695, %v499, 0
        %v784 = vsel %vm695, %v500, 0
        %v787 = vsel %vm695, %v501, 0
        %v790 = vsel %vm695, %v502, 0
        %792 = vmatprep.subr.mxu0 %v468
        %793 = vmatpush1.msra.mxu0 %v467
        %794 = vmatprep.subr.mxu0 %v470
        %795 = vmatpush1.msra.mxu0 %v469
        %796 = vmatprep.subr.mxu0 0.0
        %797 = vmatpush1.msra.mxu0 0.0
        %798 = vmatprep.subr.mxu0 0.0
        %799 = vmatpush1.msra.mxu0 0.0
        %800 = vmatprep.subr.mxu0 0.0
        %801 = vmatpush1.msra.mxu0 0.0
        %802 = vmatprep.subr.mxu0 0.0
        %803 = vmatpush1.msra.mxu0 0.0
        %804 = vmatprep.subr.mxu0 0.0
        %805 = vmatpush1.msra.mxu0 0.0
        %806 = vmatprep.subr.mxu0 0.0
        %807 = vmatpush1.msra.mxu0 0.0
        %808 = vmatprep.subr.mxu0 0.0
        %809 = vmatpush1.msra.mxu0 0.0
        %810 = vmatprep.subr.mxu0 0.0
        %811 = vmatpush1.msra.mxu0 0.0
        %812 = vmatprep.subr.mxu0 0.0
        %813 = vmatpush1.msra.mxu0 0.0
        %814 = vmatprep.subr.mxu0 0.0
        %815 = vmatpush1.msra.mxu0 0.0
        %816 = vmatprep.subr.mxu0 0.0
        %817 = vmatpush1.msra.mxu0 0.0
        %818 = vmatprep.subr.mxu0 0.0
        %819 = vmatpush1.msra.mxu0 0.0
        %820 = vmatprep.subr.mxu0 0.0
        %821 = vmatpush1.msra.mxu0 0.0
        %822 = vmatprep.subr.mxu0 0.0
        %823 = vmatpush1.msra.mxu0 0.0
        %824 = vmatprep.subr.mxu0 0.0
        %825 = vmatpush1.msra.mxu0 0.0
        %826 = vmatprep.subr.mxu0 0.0
        %827 = vmatpush1.msra.mxu0 0.0
        %828 = vmatprep.subr.mxu0 0.0
        %829 = vmatpush1.msra.mxu0 0.0
        %830 = vmatprep.subr.mxu0 0.0
        %831 = vmatpush1.msra.mxu0 0.0
        %832 = vmatprep.subr.mxu0 0.0
        %833 = vmatpush1.msra.mxu0 0.0
        %834 = vmatprep.subr.mxu0 0.0
        %835 = vmatpush1.msra.mxu0 0.0
        %836 = vmatprep.subr.mxu0 0.0
        %837 = vmatpush1.msra.mxu0 0.0
        %838 = vmatprep.subr.mxu0 0.0
        %839 = vmatpush1.msra.mxu0 0.0
        %840 = vmatprep.subr.mxu0 0.0
        %841 = vmatpush1.msra.mxu0 0.0
        %842 = vmatprep.subr.mxu0 0.0
        %843 = vmatpush1.msra.mxu0 0.0
        %844 = vmatprep.subr.mxu0 0.0
        %845 = vmatpush1.msra.mxu0 0.0
        %846 = vmatprep.subr.mxu0 0.0
        %847 = vmatpush1.msra.mxu0 0.0
        %848 = vmatprep.subr.mxu0 0.0
        %849 = vmatpush1.msra.mxu0 0.0
        %850 = vmatprep.subr.mxu0 0.0
        %851 = vmatpush1.msra.mxu0 0.0
        %852 = vmatprep.subr.mxu0 0.0
        %853 = vmatpush1.msra.mxu0 0.0
        %854 = vmatprep.subr.mxu0 0.0
        %855 = vmatpush1.msra.mxu0 0.0
        %856 = vmatprep.mubr.f32.mxu0 0.0
        %857 = vmatmul.mubr.f32.gmra.mrb[0].mxu0 %v697
        %v858 = vpop.f32.mrb[0].mxu0
        %v859 = vadd.f32 %v538, %v858
        %v860 = vpop.f32.mrb[0].mxu0
        %v861 = vadd.f32 %v538, %v860
        %862 = vmatprep.mubr.f32.mxu0 0.0
        %863 = vmatmul.mubr.f32.gmra.mrb[0].mxu0 %v700
        %v864 = vpop.f32.mrb[0].mxu0
        %v865 = vadd.f32 %v543, %v864
        %v866 = vpop.f32.mrb[0].mxu0
        %v867 = vadd.f32 %v543, %v866
        %868 = vmatprep.mubr.f32.mxu0 0.0
        %869 = vmatmul.mubr.f32.gmra.mrb[0].mxu0 %v703
        %v870 = vpop.f32.mrb[0].mxu0
        %v871 = vadd.f32 %v548, %v870
        %v872 = vpop.f32.mrb[0].mxu0
        %v873 = vadd.f32 %v548, %v872
        %874 = vmatprep.mubr.f32.mxu0 0.0
        %875 = vmatmul.mubr.f32.gmra.mrb[0].mxu0 %v706
        %v876 = vpop.f32.mrb[0].mxu0
        %v877 = vadd.f32 %v553, %v876
        %v878 = vpop.f32.mrb[0].mxu0
        %v879 = vadd.f32 %v553, %v878
        %880 = vmatprep.mubr.f32.mxu0 0.0
        %881 = vmatmul.mubr.f32.gmra.mrb[0].mxu0 %v709
        %v882 = vpop.f32.mrb[0].mxu0
        %v883 = vadd.f32 %v558, %v882
        %v884 = vpop.f32.mrb[0].mxu0
        %v885 = vadd.f32 %v558, %v884
        %886 = vmatprep.mubr.f32.mxu0 0.0
        %887 = vmatmul.mubr.f32.gmra.mrb[0].mxu0 %v712
        %v888 = vpop.f32.mrb[0].mxu0
        %v889 = vadd.f32 %v563, %v888
        %v890 = vpop.f32.mrb[0].mxu0
        %v891 = vadd.f32 %v563, %v890
        %892 = vmatprep.mubr.f32.mxu0 0.0
        %893 = vmatmul.mubr.f32.gmra.mrb[0].mxu0 %v715
        %v894 = vpop.f32.mrb[0].mxu0
        %v895 = vadd.f32 %v568, %v894
        %v896 = vpop.f32.mrb[0].mxu0
        %v897 = vadd.f32 %v568, %v896
        %898 = vmatprep.mubr.f32.mxu0 0.0
        %899 = vmatmul.mubr.f32.gmra.mrb[0].mxu0 %v718
        %v900 = vpop.f32.mrb[0].mxu0
        %v901 = vadd.f32 %v573, %v900
        %v902 = vpop.f32.mrb[0].mxu0
        %v903 = vadd.f32 %v573, %v902
        %904 = vmatprep.mubr.f32.mxu0 0.0
        %905 = vmatmul.mubr.f32.gmra.mrb[0].mxu0 %v721
        %v906 = vpop.f32.mrb[0].mxu0
        %v907 = vadd.f32 %v578, %v906
        %v908 = vpop.f32.mrb[0].mxu0
        %v909 = vadd.f32 %v578, %v908
        %910 = vmatprep.mubr.f32.mxu0 0.0
        %911 = vmatmul.mubr.f32.gmra.mrb[0].mxu0 %v724
        %v912 = vpop.f32.mrb[0].mxu0
        %v913 = vadd.f32 %v583, %v912
        %v914 = vpop.f32.mrb[0].mxu0
        %v915 = vadd.f32 %v583, %v914
        %916 = vmatprep.mubr.f32.mxu0 0.0
        %917 = vmatmul.mubr.f32.gmra.mrb[0].mxu0 %v727
        %v918 = vpop.f32.mrb[0].mxu0
        %v919 = vadd.f32 %v588, %v918
        %v920 = vpop.f32.mrb[0].mxu0
        %v921 = vadd.f32 %v588, %v920
        %922 = vmatprep.mubr.f32.mxu0 0.0
        %923 = vmatmul.mubr.f32.gmra.mrb[0].mxu0 %v730
        %v924 = vpop.f32.mrb[0].mxu0
        %v925 = vadd.f32 %v593, %v924
        %v926 = vpop.f32.mrb[0].mxu0
        %v927 = vadd.f32 %v593, %v926
        %928 = vmatprep.mubr.f32.mxu0 0.0
        %929 = vmatmul.mubr.f32.gmra.mrb[0].mxu0 %v733
        %v930 = vpop.f32.mrb[0].mxu0
        %v931 = vadd.f32 %v598, %v930
        %v932 = vpop.f32.mrb[0].mxu0
        %v933 = vadd.f32 %v598, %v932
        %934 = vmatprep.mubr.f32.mxu0 0.0
        %935 = vmatmul.mubr.f32.gmra.mrb[0].mxu0 %v736
        %v936 = vpop.f32.mrb[0].mxu0
        %v937 = vadd.f32 %v603, %v936
        %v938 = vpop.f32.mrb[0].mxu0
        %v939 = vadd.f32 %v603, %v938
        %940 = vmatprep.mubr.f32.mxu0 0.0
        %941 = vmatmul.mubr.f32.gmra.mrb[0].mxu0 %v739
        %v942 = vpop.f32.mrb[0].mxu0
        %v943 = vadd.f32 %v608, %v942
        %v944 = vpop.f32.mrb[0].mxu0
        %v945 = vadd.f32 %v608, %v944
        %946 = vmatprep.mubr.f32.mxu0 0.0
        %947 = vmatmul.mubr.f32.gmra.mrb[0].mxu0 %v742
        %v948 = vpop.f32.mrb[0].mxu0
        %v949 = vadd.f32 %v613, %v948
        %v950 = vpop.f32.mrb[0].mxu0
        %v951 = vadd.f32 %v613, %v950
        %952 = vmatprep.mubr.f32.mxu0 0.0
        %953 = vmatmul.mubr.f32.gmra.mrb[0].mxu0 %v745
        %v954 = vpop.f32.mrb[0].mxu0
        %v955 = vadd.f32 %v618, %v954
        %v956 = vpop.f32.mrb[0].mxu0
        %v957 = vadd.f32 %v618, %v956
        %958 = vmatprep.mubr.f32.mxu0 0.0
        %959 = vmatmul.mubr.f32.gmra.mrb[0].mxu0 %v748
        %v960 = vpop.f32.mrb[0].mxu0
        %v961 = vadd.f32 %v623, %v960
        %v962 = vpop.f32.mrb[0].mxu0
        %v963 = vadd.f32 %v623, %v962
        %964 = vmatprep.mubr.f32.mxu0 0.0
        %965 = vmatmul.mubr.f32.gmra.mrb[0].mxu0 %v751
        %v966 = vpop.f32.mrb[0].mxu0
        %v967 = vadd.f32 %v628, %v966
        %v968 = vpop.f32.mrb[0].mxu0
        %v969 = vadd.f32 %v628, %v968
        %970 = vmatprep.mubr.f32.mxu0 0.0
        %971 = vmatmul.mubr.f32.gmra.mrb[0].mxu0 %v754
        %v972 = vpop.f32.mrb[0].mxu0
        %v973 = vadd.f32 %v633, %v972
        %v974 = vpop.f32.mrb[0].mxu0
        %v975 = vadd.f32 %v633, %v974
        %976 = vmatprep.mubr.f32.mxu0 0.0
        %977 = vmatmul.mubr.f32.gmra.mrb[0].mxu0 %v757
        %v978 = vpop.f32.mrb[0].mxu0
        %v979 = vadd.f32 %v638, %v978
        %v980 = vpop.f32.mrb[0].mxu0
        %v981 = vadd.f32 %v638, %v980
        %982 = vmatprep.mubr.f32.mxu0 0.0
        %983 = vmatmul.mubr.f32.gmra.mrb[0].mxu0 %v760
        %v984 = vpop.f32.mrb[0].mxu0
        %v985 = vadd.f32 %v643, %v984
        %v986 = vpop.f32.mrb[0].mxu0
        %v987 = vadd.f32 %v643, %v986
        %988 = vmatprep.mubr.f32.mxu0 0.0
        %989 = vmatmul.mubr.f32.gmra.mrb[0].mxu0 %v763
        %v990 = vpop.f32.mrb[0].mxu0
        %v991 = vadd.f32 %v648, %v990
        %v992 = vpop.f32.mrb[0].mxu0
        %v993 = vadd.f32 %v648, %v992
        %994 = vmatprep.mubr.f32.mxu0 0.0
        %995 = vmatmul.mubr.f32.gmra.mrb[0].mxu0 %v766
        %v996 = vpop.f32.mrb[0].mxu0
        %v997 = vadd.f32 %v653, %v996
        %v998 = vpop.f32.mrb[0].mxu0
        %v999 = vadd.f32 %v653, %v998
        %1000 = vmatprep.mubr.f32.mxu0 0.0
        %1001 = vmatmul.mubr.f32.gmra.mrb[0].mxu0 %v769
        %v1002 = vpop.f32.mrb[0].mxu0
        %v1003 = vadd.f32 %v658, %v1002
        %v1004 = vpop.f32.mrb[0].mxu0
        %v1005 = vadd.f32 %v658, %v1004
        %1006 = vmatprep.mubr.f32.mxu0 0.0
        %1007 = vmatmul.mubr.f32.gmra.mrb[0].mxu0 %v772
        %v1008 = vpop.f32.mrb[0].mxu0
        %v1009 = vadd.f32 %v663, %v1008
        %v1010 = vpop.f32.mrb[0].mxu0
        %v1011 = vadd.f32 %v663, %v1010
        %1012 = vmatprep.mubr.f32.mxu0 0.0
        %1013 = vmatmul.mubr.f32.gmra.mrb[0].mxu0 %v775
        %v1014 = vpop.f32.mrb[0].mxu0
        %v1015 = vadd.f32 %v668, %v1014
        %v1016 = vpop.f32.mrb[0].mxu0
        %v1017 = vadd.f32 %v668, %v1016
        %1018 = vmatprep.mubr.f32.mxu0 0.0
        %1019 = vmatmul.mubr.f32.gmra.mrb[0].mxu0 %v778
        %v1020 = vpop.f32.mrb[0].mxu0
        %v1021 = vadd.f32 %v673, %v1020
        %v1022 = vpop.f32.mrb[0].mxu0
        %v1023 = vadd.f32 %v673, %v1022
        %1024 = vmatprep.mubr.f32.mxu0 0.0
        %1025 = vmatmul.mubr.f32.gmra.mrb[0].mxu0 %v781
        %v1026 = vpop.f32.mrb[0].mxu0
        %v1027 = vadd.f32 %v678, %v1026
        %v1028 = vpop.f32.mrb[0].mxu0
        %v1029 = vadd.f32 %v678, %v1028
        %1030 = vmatprep.mubr.f32.mxu0 0.0
        %1031 = vmatmul.mubr.f32.gmra.mrb[0].mxu0 %v784
        %v1032 = vpop.f32.mrb[0].mxu0
        %v1033 = vadd.f32 %v683, %v1032
        %v1034 = vpop.f32.mrb[0].mxu0
        %v1035 = vadd.f32 %v683, %v1034
        %1036 = vmatprep.mubr.f32.mxu0 0.0
        %1037 = vmatmul.mubr.f32.gmra.mrb[0].mxu0 %v787
        %v1038 = vpop.f32.mrb[0].mxu0
        %v1039 = vadd.f32 %v688, %v1038
        %v1040 = vpop.f32.mrb[0].mxu0
        %v1041 = vadd.f32 %v688, %v1040
        %1042 = vmatprep.mubr.f32.mxu0 0.0
        %1043 = vmatmul.mubr.f32.gmra.mrb[0].mxu0 %v790
        %v1044 = vpop.f32.mrb[0].mxu0
        %v1045 = vadd.f32 %v693, %v1044
        %v1046 = vpop.f32.mrb[0].mxu0
        %v1047 = vadd.f32 %v693, %v1046
        %1048 = vdwg.mxu0
        %v1049 = vmul.f32 %v859, 0.01
        %v1050 = vmul.f32 %v861, 0.01
        %v1051 = vmul.f32 %v865, 0.01
        %v1052 = vmul.f32 %v867, 0.01
        %v1053 = vmul.f32 %v871, 0.01
        %v1054 = vmul.f32 %v873, 0.01
        %v1055 = vmul.f32 %v877, 0.01
        %v1056 = vmul.f32 %v879, 0.01
        %v1057 = vmul.f32 %v883, 0.01
        %v1058 = vmul.f32 %v885, 0.01
        %v1059 = vmul.f32 %v889, 0.01
        %v1060 = vmul.f32 %v891, 0.01
        %v1061 = vmul.f32 %v895, 0.01
        %v1062 = vmul.f32 %v897, 0.01
        %v1063 = vmul.f32 %v901, 0.01
        %v1064 = vmul.f32 %v903, 0.01
        %v1065 = vmul.f32 %v907, 0.01
        %v1066 = vmul.f32 %v909, 0.01
        %v1067 = vmul.f32 %v913, 0.01
        %v1068 = vmul.f32 %v915, 0.01
        %v1069 = vmul.f32 %v919, 0.01
        %v1070 = vmul.f32 %v921, 0.01
        %v1071 = vmul.f32 %v925, 0.01
        %v1072 = vmul.f32 %v927, 0.01
        %v1073 = vmul.f32 %v931, 0.01
        %v1074 = vmul.f32 %v933, 0.01
        %v1075 = vmul.f32 %v937, 0.01
        %v1076 = vmul.f32 %v939, 0.01
        %v1077 = vmul.f32 %v943, 0.01
        %v1078 = vmul.f32 %v945, 0.01
        %v1079 = vmul.f32 %v949, 0.01
        %v1080 = vmul.f32 %v951, 0.01
        %v1081 = vmul.f32 %v955, 0.01
        %v1082 = vmul.f32 %v957, 0.01
        %v1083 = vmul.f32 %v961, 0.01
        %v1084 = vmul.f32 %v963, 0.01
        %v1085 = vmul.f32 %v967, 0.01
        %v1086 = vmul.f32 %v969, 0.01
        %v1087 = vmul.f32 %v973, 0.01
        %v1088 = vmul.f32 %v975, 0.01
        %v1089 = vmul.f32 %v979, 0.01
        %v1090 = vmul.f32 %v981, 0.01
        %v1091 = vmul.f32 %v985, 0.01
        %v1092 = vmul.f32 %v987, 0.01
        %v1093 = vmul.f32 %v991, 0.01
        %v1094 = vmul.f32 %v993, 0.01
        %v1095 = vmul.f32 %v997, 0.01
        %v1096 = vmul.f32 %v999, 0.01
        %v1097 = vmul.f32 %v1003, 0.01
        %v1098 = vmul.f32 %v1005, 0.01
        %v1099 = vmul.f32 %v1009, 0.01
        %v1100 = vmul.f32 %v1011, 0.01
        %v1101 = vmul.f32 %v1015, 0.01
        %v1102 = vmul.f32 %v1017, 0.01
        %v1103 = vmul.f32 %v1021, 0.01
        %v1104 = vmul.f32 %v1023, 0.01
        %v1105 = vmul.f32 %v1027, 0.01
        %v1106 = vmul.f32 %v1029, 0.01
        %v1107 = vmul.f32 %v1033, 0.01
        %v1108 = vmul.f32 %v1035, 0.01
        %v1109 = vmul.f32 %v1039, 0.01
        %v1110 = vmul.f32 %v1041, 0.01
        %v1111 = vmul.f32 %v1045, 0.01
        %v1112 = vmul.f32 %v1047, 0.01
        %v1113 = vmax.f32 %v859, %v1049
        %v1114 = vmax.f32 %v861, %v1050
        %v1115 = vmax.f32 %v865, %v1051
        %v1116 = vmax.f32 %v867, %v1052
        %v1117 = vmax.f32 %v871, %v1053
        %v1118 = vmax.f32 %v873, %v1054
        %v1119 = vmax.f32 %v877, %v1055
        %v1120 = vmax.f32 %v879, %v1056
        %v1121 = vmax.f32 %v883, %v1057
        %v1122 = vmax.f32 %v885, %v1058
        %v1123 = vmax.f32 %v889, %v1059
        %v1124 = vmax.f32 %v891, %v1060
        %v1125 = vmax.f32 %v895, %v1061
        %v1126 = vmax.f32 %v897, %v1062
        %v1127 = vmax.f32 %v901, %v1063
        %v1128 = vmax.f32 %v903, %v1064
        %v1129 = vmax.f32 %v907, %v1065
        %v1130 = vmax.f32 %v909, %v1066
        %v1131 = vmax.f32 %v913, %v1067
        %v1132 = vmax.f32 %v915, %v1068
        %v1133 = vmax.f32 %v919, %v1069
        %v1134 = vmax.f32 %v921, %v1070
        %v1135 = vmax.f32 %v925, %v1071
        %v1136 = vmax.f32 %v927, %v1072
        %v1137 = vmax.f32 %v931, %v1073
        %v1138 = vmax.f32 %v933, %v1074
        %v1139 = vmax.f32 %v937, %v1075
        %v1140 = vmax.f32 %v939, %v1076
        %v1141 = vmax.f32 %v943, %v1077
        %v1142 = vmax.f32 %v945, %v1078
        %v1143 = vmax.f32 %v949, %v1079
        %v1144 = vmax.f32 %v951, %v1080
        %v1145 = vmax.f32 %v955, %v1081
        %v1146 = vmax.f32 %v957, %v1082
        %v1147 = vmax.f32 %v961, %v1083
        %v1148 = vmax.f32 %v963, %v1084
        %v1149 = vmax.f32 %v967, %v1085
        %v1150 = vmax.f32 %v969, %v1086
        %v1151 = vmax.f32 %v973, %v1087
        %v1152 = vmax.f32 %v975, %v1088
        %v1153 = vmax.f32 %v979, %v1089
        %v1154 = vmax.f32 %v981, %v1090
        %v1155 = vmax.f32 %v985, %v1091
        %v1156 = vmax.f32 %v987, %v1092
        %v1157 = vmax.f32 %v991, %v1093
        %v1158 = vmax.f32 %v993, %v1094
        %v1159 = vmax.f32 %v997, %v1095
        %v1160 = vmax.f32 %v999, %v1096
        %v1161 = vmax.f32 %v1003, %v1097
        %v1162 = vmax.f32 %v1005, %v1098
        %v1163 = vmax.f32 %v1009, %v1099
        %v1164 = vmax.f32 %v1011, %v1100
        %v1165 = vmax.f32 %v1015, %v1101
        %v1166 = vmax.f32 %v1017, %v1102
        %v1167 = vmax.f32 %v1021, %v1103
        %v1168 = vmax.f32 %v1023, %v1104
        %v1169 = vmax.f32 %v1027, %v1105
        %v1170 = vmax.f32 %v1029, %v1106
        %v1171 = vmax.f32 %v1033, %v1107
        %v1172 = vmax.f32 %v1035, %v1108
        %v1173 = vmax.f32 %v1039, %v1109
        %v1174 = vmax.f32 %v1041, %v1110
        %v1175 = vmax.f32 %v1045, %v1111
        %v1176 = vmax.f32 %v1047, %v1112
        %v1177 = vld [vmem:[%s3] sm:$0xff]
        %v1178 = vld [vmem:[%s3 + $0x8] sm:$0xff]
        %v1179 = vld [vmem:[%s3 + $0x10] sm:$0xff]
        %v1180 = vld [vmem:[%s3 + $0x18] sm:$0xff]
        %v1181 = vld [vmem:[%s3 + $0x20] sm:$0xff]
        %v1182 = vld [vmem:[%s3 + $0x28] sm:$0xff]
        %v1183 = vld [vmem:[%s3 + $0x30] sm:$0xff]
        %v1184 = vld [vmem:[%s3 + $0x38] sm:$0xff]
        %v1185 = vld [vmem:[%s3 + $0x40] sm:$0xff]
        %v1186 = vld [vmem:[%s3 + $0x48] sm:$0xff]
        %v1187 = vld [vmem:[%s3 + $0x50] sm:$0xff]
        %v1188 = vld [vmem:[%s3 + $0x58] sm:$0xff]
        %v1189 = vld [vmem:[%s3 + $0x60] sm:$0xff]
        %v1190 = vld [vmem:[%s3 + $0x68] sm:$0xff]
        %v1191 = vld [vmem:[%s3 + $0x70] sm:$0xff]
        %v1192 = vld [vmem:[%s3 + $0x78] sm:$0xff]
        %v1193 = vld [vmem:[%s3 + $0x80] sm:$0xff]
        %v1194 = vld [vmem:[%s3 + $0x88] sm:$0xff]
        %v1195 = vld [vmem:[%s3 + $0x90] sm:$0xff]
        %v1196 = vld [vmem:[%s3 + $0x98] sm:$0xff]
        %v1197 = vld [vmem:[%s3 + $0xa0] sm:$0xff]
        %v1198 = vld [vmem:[%s3 + $0xa8] sm:$0xff]
        %v1199 = vld [vmem:[%s3 + $0xb0] sm:$0xff]
        %v1200 = vld [vmem:[%s3 + $0xb8] sm:$0xff]
        %v1201 = vld [vmem:[%s3 + $0xc0] sm:$0xff]
        %v1202 = vld [vmem:[%s3 + $0xc8] sm:$0xff]
        %v1203 = vld [vmem:[%s3 + $0xd0] sm:$0xff]
        %v1204 = vld [vmem:[%s3 + $0xd8] sm:$0xff]
        %v1205 = vld [vmem:[%s3 + $0xe0] sm:$0xff]
        %v1206 = vld [vmem:[%s3 + $0xe8] sm:$0xff]
        %v1207 = vld [vmem:[%s3 + $0xf0] sm:$0xff]
        %v1208 = vld [vmem:[%s3 + $0xf8] sm:$0xff]
        %v1209 = vld [vmem:[%s4] sm:$0xff]
        %v1210 = vld [vmem:[%s4 + $0x8] sm:$0xff]
        %v1211 = vld [vmem:[%s4 + $0x10] sm:$0xff]
        %v1212 = vld [vmem:[%s4 + $0x18] sm:$0xff]
        %v1213 = vld [vmem:[%s4 + $0x20] sm:$0xff]
        %v1214 = vld [vmem:[%s4 + $0x28] sm:$0xff]
        %v1215 = vld [vmem:[%s4 + $0x30] sm:$0xff]
        %v1216 = vld [vmem:[%s4 + $0x38] sm:$0xff]
        %v1217 = vld [vmem:[%s4 + $0x40] sm:$0xff]
        %v1218 = vld [vmem:[%s4 + $0x48] sm:$0xff]
        %v1219 = vld [vmem:[%s4 + $0x50] sm:$0xff]
        %v1220 = vld [vmem:[%s4 + $0x58] sm:$0xff]
        %v1221 = vld [vmem:[%s4 + $0x60] sm:$0xff]
        %v1222 = vld [vmem:[%s4 + $0x68] sm:$0xff]
        %v1223 = vld [vmem:[%s4 + $0x70] sm:$0xff]
        %v1224 = vld [vmem:[%s4 + $0x78] sm:$0xff]
        %1226 = vset.pattern.permute.xlu0 0
        %1227 = vperm.xlu0 %1226, %v1209
        %v1228 = vpop.permute.xlu0 %1227
        %1231 = vset.pattern.permute.xlu0 0
        %1232 = vperm.xlu0 %1231, %v1210
        %v1233 = vpop.permute.xlu0 %1232
        %1236 = vset.pattern.permute.xlu0 0
        %1237 = vperm.xlu0 %1236, %v1211
        %v1238 = vpop.permute.xlu0 %1237
        %1241 = vset.pattern.permute.xlu0 0
        %1242 = vperm.xlu0 %1241, %v1212
        %v1243 = vpop.permute.xlu0 %1242
        %1246 = vset.pattern.permute.xlu0 0
        %1247 = vperm.xlu0 %1246, %v1213
        %v1248 = vpop.permute.xlu0 %1247
        %1251 = vset.pattern.permute.xlu0 0
        %1252 = vperm.xlu0 %1251, %v1214
        %v1253 = vpop.permute.xlu0 %1252
        %1256 = vset.pattern.permute.xlu0 0
        %1257 = vperm.xlu0 %1256, %v1215
        %v1258 = vpop.permute.xlu0 %1257
        %1261 = vset.pattern.permute.xlu0 0
        %1262 = vperm.xlu0 %1261, %v1216
        %v1263 = vpop.permute.xlu0 %1262
        %1266 = vset.pattern.permute.xlu0 0
        %1267 = vperm.xlu0 %1266, %v1217
        %v1268 = vpop.permute.xlu0 %1267
        %1271 = vset.pattern.permute.xlu0 0
        %1272 = vperm.xlu0 %1271, %v1218
        %v1273 = vpop.permute.xlu0 %1272
        %1276 = vset.pattern.permute.xlu0 0
        %1277 = vperm.xlu0 %1276, %v1219
        %v1278 = vpop.permute.xlu0 %1277
        %1281 = vset.pattern.permute.xlu0 0
        %1282 = vperm.xlu0 %1281, %v1220
        %v1283 = vpop.permute.xlu0 %1282
        %1286 = vset.pattern.permute.xlu0 0
        %1287 = vperm.xlu0 %1286, %v1221
        %v1288 = vpop.permute.xlu0 %1287
        %1291 = vset.pattern.permute.xlu0 0
        %1292 = vperm.xlu0 %1291, %v1222
        %v1293 = vpop.permute.xlu0 %1292
        %1296 = vset.pattern.permute.xlu0 0
        %1297 = vperm.xlu0 %1296, %v1223
        %v1298 = vpop.permute.xlu0 %1297
        %1301 = vset.pattern.permute.xlu0 0
        %1302 = vperm.xlu0 %1301, %v1224
        %v1303 = vpop.permute.xlu0 %1302
        %1305 = vmatprep.subr.mxu0 %v1114
        %1306 = vmatpush1.msra.mxu0 %v1113
        %1307 = vmatprep.subr.mxu0 %v1116
        %1308 = vmatpush1.msra.mxu0 %v1115
        %1309 = vmatprep.subr.mxu0 %v1118
        %1310 = vmatpush1.msra.mxu0 %v1117
        %1311 = vmatprep.subr.mxu0 %v1120
        %1312 = vmatpush1.msra.mxu0 %v1119
        %1313 = vmatprep.subr.mxu0 %v1122
        %1314 = vmatpush1.msra.mxu0 %v1121
        %1315 = vmatprep.subr.mxu0 %v1124
        %1316 = vmatpush1.msra.mxu0 %v1123
        %1317 = vmatprep.subr.mxu0 %v1126
        %1318 = vmatpush1.msra.mxu0 %v1125
        %1319 = vmatprep.subr.mxu0 %v1128
        %1320 = vmatpush1.msra.mxu0 %v1127
        %1321 = vmatprep.subr.mxu0 %v1130
        %1322 = vmatpush1.msra.mxu0 %v1129
        %1323 = vmatprep.subr.mxu0 %v1132
        %1324 = vmatpush1.msra.mxu0 %v1131
        %1325 = vmatprep.subr.mxu0 %v1134
        %1326 = vmatpush1.msra.mxu0 %v1133
        %1327 = vmatprep.subr.mxu0 %v1136
        %1328 = vmatpush1.msra.mxu0 %v1135
        %1329 = vmatprep.subr.mxu0 %v1138
        %1330 = vmatpush1.msra.mxu0 %v1137
        %1331 = vmatprep.subr.mxu0 %v1140
        %1332 = vmatpush1.msra.mxu0 %v1139
        %1333 = vmatprep.subr.mxu0 %v1142
        %1334 = vmatpush1.msra.mxu0 %v1141
        %1335 = vmatprep.subr.mxu0 %v1144
        %1336 = vmatpush1.msra.mxu0 %v1143
        %1337 = vmatprep.subr.mxu0 %v1146
        %1338 = vmatpush1.msra.mxu0 %v1145
        %1339 = vmatprep.subr.mxu0 %v1148
        %1340 = vmatpush1.msra.mxu0 %v1147
        %1341 = vmatprep.subr.mxu0 %v1150
        %1342 = vmatpush1.msra.mxu0 %v1149
        %1343 = vmatprep.subr.mxu0 %v1152
        %1344 = vmatpush1.msra.mxu0 %v1151
        %1345 = vmatprep.subr.mxu0 %v1154
        %1346 = vmatpush1.msra.mxu0 %v1153
        %1347 = vmatprep.subr.mxu0 %v1156
        %1348 = vmatpush1.msra.mxu0 %v1155
        %1349 = vmatprep.subr.mxu0 %v1158
        %1350 = vmatpush1.msra.mxu0 %v1157
        %1351 = vmatprep.subr.mxu0 %v1160
        %1352 = vmatpush1.msra.mxu0 %v1159
        %1353 = vmatprep.subr.mxu0 %v1162
        %1354 = vmatpush1.msra.mxu0 %v1161
        %1355 = vmatprep.subr.mxu0 %v1164
        %1356 = vmatpush1.msra.mxu0 %v1163
        %1357 = vmatprep.subr.mxu0 %v1166
        %1358 = vmatpush1.msra.mxu0 %v1165
        %1359 = vmatprep.subr.mxu0 %v1168
        %1360 = vmatpush1.msra.mxu0 %v1167
        %1361 = vmatprep.subr.mxu0 %v1170
        %1362 = vmatpush1.msra.mxu0 %v1169
        %1363 = vmatprep.subr.mxu0 %v1172
        %1364 = vmatpush1.msra.mxu0 %v1171
        %1365 = vmatprep.subr.mxu0 %v1174
        %1366 = vmatpush1.msra.mxu0 %v1173
        %1367 = vmatprep.subr.mxu0 %v1176
        %1368 = vmatpush1.msra.mxu0 %v1175
        %1369 = vmatprep.mubr.f32.mxu0 %v1178
        %1370 = vmatmul.mubr.f32.gmra.mrb[0].mxu0 %v1177
        %v1371 = vpop.f32.mrb[0].mxu0
        %v1372 = vadd.f32 %v1228, %v1371
        %v1373 = vpop.f32.mrb[0].mxu0
        %v1374 = vadd.f32 %v1228, %v1373
        %1375 = vmatprep.mubr.f32.mxu0 %v1180
        %1376 = vmatmul.mubr.f32.gmra.mrb[0].mxu0 %v1179
        %v1377 = vpop.f32.mrb[0].mxu0
        %v1378 = vadd.f32 %v1233, %v1377
        %v1379 = vpop.f32.mrb[0].mxu0
        %v1380 = vadd.f32 %v1233, %v1379
        %1381 = vmatprep.mubr.f32.mxu0 %v1182
        %1382 = vmatmul.mubr.f32.gmra.mrb[0].mxu0 %v1181
        %v1383 = vpop.f32.mrb[0].mxu0
        %v1384 = vadd.f32 %v1238, %v1383
        %v1385 = vpop.f32.mrb[0].mxu0
        %v1386 = vadd.f32 %v1238, %v1385
        %1387 = vmatprep.mubr.f32.mxu0 %v1184
        %1388 = vmatmul.mubr.f32.gmra.mrb[0].mxu0 %v1183
        %v1389 = vpop.f32.mrb[0].mxu0
        %v1390 = vadd.f32 %v1243, %v1389
        %v1391 = vpop.f32.mrb[0].mxu0
        %v1392 = vadd.f32 %v1243, %v1391
        %1393 = vmatprep.mubr.f32.mxu0 %v1186
        %1394 = vmatmul.mubr.f32.gmra.mrb[0].mxu0 %v1185
        %v1395 = vpop.f32.mrb[0].mxu0
        %v1396 = vadd.f32 %v1248, %v1395
        %v1397 = vpop.f32.mrb[0].mxu0
        %v1398 = vadd.f32 %v1248, %v1397
        %1399 = vmatprep.mubr.f32.mxu0 %v1188
        %1400 = vmatmul.mubr.f32.gmra.mrb[0].mxu0 %v1187
        %v1401 = vpop.f32.mrb[0].mxu0
        %v1402 = vadd.f32 %v1253, %v1401
        %v1403 = vpop.f32.mrb[0].mxu0
        %v1404 = vadd.f32 %v1253, %v1403
        %1405 = vmatprep.mubr.f32.mxu0 %v1190
        %1406 = vmatmul.mubr.f32.gmra.mrb[0].mxu0 %v1189
        %v1407 = vpop.f32.mrb[0].mxu0
        %v1408 = vadd.f32 %v1258, %v1407
        %v1409 = vpop.f32.mrb[0].mxu0
        %v1410 = vadd.f32 %v1258, %v1409
        %1411 = vmatprep.mubr.f32.mxu0 %v1192
        %1412 = vmatmul.mubr.f32.gmra.mrb[0].mxu0 %v1191
        %v1413 = vpop.f32.mrb[0].mxu0
        %v1414 = vadd.f32 %v1263, %v1413
        %v1415 = vpop.f32.mrb[0].mxu0
        %v1416 = vadd.f32 %v1263, %v1415
        %1417 = vmatprep.mubr.f32.mxu0 %v1194
        %1418 = vmatmul.mubr.f32.gmra.mrb[0].mxu0 %v1193
        %v1419 = vpop.f32.mrb[0].mxu0
        %v1420 = vadd.f32 %v1268, %v1419
        %v1421 = vpop.f32.mrb[0].mxu0
        %v1422 = vadd.f32 %v1268, %v1421
        %1423 = vmatprep.mubr.f32.mxu0 %v1196
        %1424 = vmatmul.mubr.f32.gmra.mrb[0].mxu0 %v1195
        %v1425 = vpop.f32.mrb[0].mxu0
        %v1426 = vadd.f32 %v1273, %v1425
        %v1427 = vpop.f32.mrb[0].mxu0
        %v1428 = vadd.f32 %v1273, %v1427
        %1429 = vmatprep.mubr.f32.mxu0 %v1198
        %1430 = vmatmul.mubr.f32.gmra.mrb[0].mxu0 %v1197
        %v1431 = vpop.f32.mrb[0].mxu0
        %v1432 = vadd.f32 %v1278, %v1431
        %v1433 = vpop.f32.mrb[0].mxu0
        %v1434 = vadd.f32 %v1278, %v1433
        %1435 = vmatprep.mubr.f32.mxu0 %v1200
        %1436 = vmatmul.mubr.f32.gmra.mrb[0].mxu0 %v1199
        %v1437 = vpop.f32.mrb[0].mxu0
        %v1438 = vadd.f32 %v1283, %v1437
        %v1439 = vpop.f32.mrb[0].mxu0
        %v1440 = vadd.f32 %v1283, %v1439
        %1441 = vmatprep.mubr.f32.mxu0 %v1202
        %1442 = vmatmul.mubr.f32.gmra.mrb[0].mxu0 %v1201
        %v1443 = vpop.f32.mrb[0].mxu0
        %v1444 = vadd.f32 %v1288, %v1443
        %v1445 = vpop.f32.mrb[0].mxu0
        %v1446 = vadd.f32 %v1288, %v1445
        %1447 = vmatprep.mubr.f32.mxu0 %v1204
        %1448 = vmatmul.mubr.f32.gmra.mrb[0].mxu0 %v1203
        %v1449 = vpop.f32.mrb[0].mxu0
        %v1450 = vadd.f32 %v1293, %v1449
        %v1451 = vpop.f32.mrb[0].mxu0
        %v1452 = vadd.f32 %v1293, %v1451
        %1453 = vmatprep.mubr.f32.mxu0 %v1206
        %1454 = vmatmul.mubr.f32.gmra.mrb[0].mxu0 %v1205
        %v1455 = vpop.f32.mrb[0].mxu0
        %v1456 = vadd.f32 %v1298, %v1455
        %v1457 = vpop.f32.mrb[0].mxu0
        %v1458 = vadd.f32 %v1298, %v1457
        %1459 = vmatprep.mubr.f32.mxu0 %v1208
        %1460 = vmatmul.mubr.f32.gmra.mrb[0].mxu0 %v1207
        %v1461 = vpop.f32.mrb[0].mxu0
        %v1462 = vadd.f32 %v1303, %v1461
        %v1463 = vpop.f32.mrb[0].mxu0
        %v1464 = vadd.f32 %v1303, %v1463
        %1465 = vdwg.mxu0
        %v1466 = vmul.f32 %v1372, 0.01
        %v1467 = vmul.f32 %v1374, 0.01
        %v1468 = vmul.f32 %v1378, 0.01
        %v1469 = vmul.f32 %v1380, 0.01
        %v1470 = vmul.f32 %v1384, 0.01
        %v1471 = vmul.f32 %v1386, 0.01
        %v1472 = vmul.f32 %v1390, 0.01
        %v1473 = vmul.f32 %v1392, 0.01
        %v1474 = vmul.f32 %v1396, 0.01
        %v1475 = vmul.f32 %v1398, 0.01
        %v1476 = vmul.f32 %v1402, 0.01
        %v1477 = vmul.f32 %v1404, 0.01
        %v1478 = vmul.f32 %v1408, 0.01
        %v1479 = vmul.f32 %v1410, 0.01
        %v1480 = vmul.f32 %v1414, 0.01
        %v1481 = vmul.f32 %v1416, 0.01
        %v1482 = vmul.f32 %v1420, 0.01
        %v1483 = vmul.f32 %v1422, 0.01
        %v1484 = vmul.f32 %v1426, 0.01
        %v1485 = vmul.f32 %v1428, 0.01
        %v1486 = vmul.f32 %v1432, 0.01
        %v1487 = vmul.f32 %v1434, 0.01
        %v1488 = vmul.f32 %v1438, 0.01
        %v1489 = vmul.f32 %v1440, 0.01
        %v1490 = vmul.f32 %v1444, 0.01
        %v1491 = vmul.f32 %v1446, 0.01
        %v1492 = vmul.f32 %v1450, 0.01
        %v1493 = vmul.f32 %v1452, 0.01
        %v1494 = vmul.f32 %v1456, 0.01
        %v1495 = vmul.f32 %v1458, 0.01
        %v1496 = vmul.f32 %v1462, 0.01
        %v1497 = vmul.f32 %v1464, 0.01
        %v1498 = vmax.f32 %v1372, %v1466
        %v1499 = vmax.f32 %v1374, %v1467
        %v1500 = vmax.f32 %v1378, %v1468
        %v1501 = vmax.f32 %v1380, %v1469
        %v1502 = vmax.f32 %v1384, %v1470
        %v1503 = vmax.f32 %v1386, %v1471
        %v1504 = vmax.f32 %v1390, %v1472
        %v1505 = vmax.f32 %v1392, %v1473
        %v1506 = vmax.f32 %v1396, %v1474
        %v1507 = vmax.f32 %v1398, %v1475
        %v1508 = vmax.f32 %v1402, %v1476
        %v1509 = vmax.f32 %v1404, %v1477
        %v1510 = vmax.f32 %v1408, %v1478
        %v1511 = vmax.f32 %v1410, %v1479
        %v1512 = vmax.f32 %v1414, %v1480
        %v1513 = vmax.f32 %v1416, %v1481
        %v1514 = vmax.f32 %v1420, %v1482
        %v1515 = vmax.f32 %v1422, %v1483
        %v1516 = vmax.f32 %v1426, %v1484
        %v1517 = vmax.f32 %v1428, %v1485
        %v1518 = vmax.f32 %v1432, %v1486
        %v1519 = vmax.f32 %v1434, %v1487
        %v1520 = vmax.f32 %v1438, %v1488
        %v1521 = vmax.f32 %v1440, %v1489
        %v1522 = vmax.f32 %v1444, %v1490
        %v1523 = vmax.f32 %v1446, %v1491
        %v1524 = vmax.f32 %v1450, %v1492
        %v1525 = vmax.f32 %v1452, %v1493
        %v1526 = vmax.f32 %v1456, %v1494
        %v1527 = vmax.f32 %v1458, %v1495
        %v1528 = vmax.f32 %v1462, %v1496
        %v1529 = vmax.f32 %v1464, %v1497
        %v1530 = vld [vmem:[%s5] sm:$0xff]
        %v1531 = vld [vmem:[%s5 + $0x8] sm:$0xff]
        %v1532 = vld [vmem:[%s5 + $0x10] sm:$0xff]
        %v1533 = vld [vmem:[%s5 + $0x18] sm:$0xff]
        %v1534 = vld [vmem:[%s5 + $0x20] sm:$0xff]
        %v1535 = vld [vmem:[%s5 + $0x28] sm:$0xff]
        %v1536 = vld [vmem:[%s5 + $0x30] sm:$0xff]
        %v1537 = vld [vmem:[%s5 + $0x38] sm:$0xff]
        %v1538 = vld [vmem:[%s6] sm:$0xff]
        %v1539 = vld [vmem:[%s6 + $0x8] sm:$0xff]
        %v1540 = vld [vmem:[%s6 + $0x10] sm:$0xff]
        %v1541 = vld [vmem:[%s6 + $0x18] sm:$0xff]
        %v1542 = vld [vmem:[%s6 + $0x20] sm:$0xff]
        %v1543 = vld [vmem:[%s6 + $0x28] sm:$0xff]
        %v1544 = vld [vmem:[%s6 + $0x30] sm:$0xff]
        %v1545 = vld [vmem:[%s6 + $0x38] sm:$0xff]
        %1547 = vset.pattern.permute.xlu0 0
        %1548 = vperm.xlu0 %1547, %v1538
        %v1549 = vpop.permute.xlu0 %1548
        %1552 = vset.pattern.permute.xlu0 0
        %1553 = vperm.xlu0 %1552, %v1539
        %v1554 = vpop.permute.xlu0 %1553
        %1557 = vset.pattern.permute.xlu0 0
        %1558 = vperm.xlu0 %1557, %v1540
        %v1559 = vpop.permute.xlu0 %1558
        %1562 = vset.pattern.permute.xlu0 0
        %1563 = vperm.xlu0 %1562, %v1541
        %v1564 = vpop.permute.xlu0 %1563
        %1567 = vset.pattern.permute.xlu0 0
        %1568 = vperm.xlu0 %1567, %v1542
        %v1569 = vpop.permute.xlu0 %1568
        %1572 = vset.pattern.permute.xlu0 0
        %1573 = vperm.xlu0 %1572, %v1543
        %v1574 = vpop.permute.xlu0 %1573
        %1577 = vset.pattern.permute.xlu0 0
        %1578 = vperm.xlu0 %1577, %v1544
        %v1579 = vpop.permute.xlu0 %1578
        %1582 = vset.pattern.permute.xlu0 0
        %1583 = vperm.xlu0 %1582, %v1545
        %v1584 = vpop.permute.xlu0 %1583
        %1586 = vmatprep.subr.mxu0 %v1499
        %1587 = vmatpush1.msra.mxu0 %v1498
        %1588 = vmatprep.subr.mxu0 %v1501
        %1589 = vmatpush1.msra.mxu0 %v1500
        %1590 = vmatprep.subr.mxu0 %v1503
        %1591 = vmatpush1.msra.mxu0 %v1502
        %1592 = vmatprep.subr.mxu0 %v1505
        %1593 = vmatpush1.msra.mxu0 %v1504
        %1594 = vmatprep.subr.mxu0 %v1507
        %1595 = vmatpush1.msra.mxu0 %v1506
        %1596 = vmatprep.subr.mxu0 %v1509
        %1597 = vmatpush1.msra.mxu0 %v1508
        %1598 = vmatprep.subr.mxu0 %v1511
        %1599 = vmatpush1.msra.mxu0 %v1510
        %1600 = vmatprep.subr.mxu0 %v1513
        %1601 = vmatpush1.msra.mxu0 %v1512
        %1602 = vmatprep.subr.mxu0 %v1515
        %1603 = vmatpush1.msra.mxu0 %v1514
        %1604 = vmatprep.subr.mxu0 %v1517
        %1605 = vmatpush1.msra.mxu0 %v1516
        %1606 = vmatprep.subr.mxu0 %v1519
        %1607 = vmatpush1.msra.mxu0 %v1518
        %1608 = vmatprep.subr.mxu0 %v1521
        %1609 = vmatpush1.msra.mxu0 %v1520
        %1610 = vmatprep.subr.mxu0 %v1523
        %1611 = vmatpush1.msra.mxu0 %v1522
        %1612 = vmatprep.subr.mxu0 %v1525
        %1613 = vmatpush1.msra.mxu0 %v1524
        %1614 = vmatprep.subr.mxu0 %v1527
        %1615 = vmatpush1.msra.mxu0 %v1526
        %1616 = vmatprep.subr.mxu0 %v1529
        %1617 = vmatpush1.msra.mxu0 %v1528
        %1618 = vmatprep.subr.mxu0 0.0
        %1619 = vmatpush1.msra.mxu0 0.0
        %1620 = vmatprep.subr.mxu0 0.0
        %1621 = vmatpush1.msra.mxu0 0.0
        %1622 = vmatprep.subr.mxu0 0.0
        %1623 = vmatpush1.msra.mxu0 0.0
        %1624 = vmatprep.subr.mxu0 0.0
        %1625 = vmatpush1.msra.mxu0 0.0
        %1626 = vmatprep.subr.mxu0 0.0
        %1627 = vmatpush1.msra.mxu0 0.0
        %1628 = vmatprep.subr.mxu0 0.0
        %1629 = vmatpush1.msra.mxu0 0.0
        %1630 = vmatprep.subr.mxu0 0.0
        %1631 = vmatpush1.msra.mxu0 0.0
        %1632 = vmatprep.subr.mxu0 0.0
        %1633 = vmatpush1.msra.mxu0 0.0
        %1634 = vmatprep.subr.mxu0 0.0
        %1635 = vmatpush1.msra.mxu0 0.0
        %1636 = vmatprep.subr.mxu0 0.0
        %1637 = vmatpush1.msra.mxu0 0.0
        %1638 = vmatprep.subr.mxu0 0.0
        %1639 = vmatpush1.msra.mxu0 0.0
        %1640 = vmatprep.subr.mxu0 0.0
        %1641 = vmatpush1.msra.mxu0 0.0
        %1642 = vmatprep.subr.mxu0 0.0
        %1643 = vmatpush1.msra.mxu0 0.0
        %1644 = vmatprep.subr.mxu0 0.0
        %1645 = vmatpush1.msra.mxu0 0.0
        %1646 = vmatprep.subr.mxu0 0.0
        %1647 = vmatpush1.msra.mxu0 0.0
        %1648 = vmatprep.subr.mxu0 0.0
        %1649 = vmatpush1.msra.mxu0 0.0
        %1650 = vmatprep.mubr.f32.mxu0 0.0
        %1651 = vmatmul.mubr.f32.gmra.mrb[0].mxu0 %v1530
        %v1652 = vpop.f32.mrb[0].mxu0
        %v1653 = vadd.f32 %v1549, %v1652
        %v1654 = vpop.f32.mrb[0].mxu0
        %v1655 = vadd.f32 %v1549, %v1654
        %1656 = vmatprep.mubr.f32.mxu0 0.0
        %1657 = vmatmul.mubr.f32.gmra.mrb[0].mxu0 %v1531
        %v1658 = vpop.f32.mrb[0].mxu0
        %v1659 = vadd.f32 %v1554, %v1658
        %v1660 = vpop.f32.mrb[0].mxu0
        %v1661 = vadd.f32 %v1554, %v1660
        %1662 = vmatprep.mubr.f32.mxu0 0.0
        %1663 = vmatmul.mubr.f32.gmra.mrb[0].mxu0 %v1532
        %v1664 = vpop.f32.mrb[0].mxu0
        %v1665 = vadd.f32 %v1559, %v1664
        %v1666 = vpop.f32.mrb[0].mxu0
        %v1667 = vadd.f32 %v1559, %v1666
        %1668 = vmatprep.mubr.f32.mxu0 0.0
        %1669 = vmatmul.mubr.f32.gmra.mrb[0].mxu0 %v1533
        %v1670 = vpop.f32.mrb[0].mxu0
        %v1671 = vadd.f32 %v1564, %v1670
        %v1672 = vpop.f32.mrb[0].mxu0
        %v1673 = vadd.f32 %v1564, %v1672
        %1674 = vmatprep.mubr.f32.mxu0 0.0
        %1675 = vmatmul.mubr.f32.gmra.mrb[0].mxu0 %v1534
        %v1676 = vpop.f32.mrb[0].mxu0
        %v1677 = vadd.f32 %v1569, %v1676
        %v1678 = vpop.f32.mrb[0].mxu0
        %v1679 = vadd.f32 %v1569, %v1678
        %1680 = vmatprep.mubr.f32.mxu0 0.0
        %1681 = vmatmul.mubr.f32.gmra.mrb[0].mxu0 %v1535
        %v1682 = vpop.f32.mrb[0].mxu0
        %v1683 = vadd.f32 %v1574, %v1682
        %v1684 = vpop.f32.mrb[0].mxu0
        %v1685 = vadd.f32 %v1574, %v1684
        %1686 = vmatprep.mubr.f32.mxu0 0.0
        %1687 = vmatmul.mubr.f32.gmra.mrb[0].mxu0 %v1536
        %v1688 = vpop.f32.mrb[0].mxu0
        %v1689 = vadd.f32 %v1579, %v1688
        %v1690 = vpop.f32.mrb[0].mxu0
        %v1691 = vadd.f32 %v1579, %v1690
        %1692 = vmatprep.mubr.f32.mxu0 0.0
        %1693 = vmatmul.mubr.f32.gmra.mrb[0].mxu0 %v1537
        %v1694 = vpop.f32.mrb[0].mxu0
        %v1695 = vadd.f32 %v1584, %v1694
        %v1696 = vpop.f32.mrb[0].mxu0
        %v1697 = vadd.f32 %v1584, %v1696
        %1698 = vdwg.mxu0
        %v1699 = vmul.f32 %v1653, 0.01
        %v1700 = vmul.f32 %v1655, 0.01
        %v1701 = vmul.f32 %v1659, 0.01
        %v1702 = vmul.f32 %v1661, 0.01
        %v1703 = vmul.f32 %v1665, 0.01
        %v1704 = vmul.f32 %v1667, 0.01
        %v1705 = vmul.f32 %v1671, 0.01
        %v1706 = vmul.f32 %v1673, 0.01
        %v1707 = vmul.f32 %v1677, 0.01
        %v1708 = vmul.f32 %v1679, 0.01
        %v1709 = vmul.f32 %v1683, 0.01
        %v1710 = vmul.f32 %v1685, 0.01
        %v1711 = vmul.f32 %v1689, 0.01
        %v1712 = vmul.f32 %v1691, 0.01
        %v1713 = vmul.f32 %v1695, 0.01
        %v1714 = vmul.f32 %v1697, 0.01
        %v1715 = vmax.f32 %v1653, %v1699
        %v1716 = vmax.f32 %v1655, %v1700
        %v1717 = vmax.f32 %v1659, %v1701
        %v1718 = vmax.f32 %v1661, %v1702
        %v1719 = vmax.f32 %v1665, %v1703
        %v1720 = vmax.f32 %v1667, %v1704
        %v1721 = vmax.f32 %v1671, %v1705
        %v1722 = vmax.f32 %v1673, %v1706
        %v1723 = vmax.f32 %v1677, %v1707
        %v1724 = vmax.f32 %v1679, %v1708
        %v1725 = vmax.f32 %v1683, %v1709
        %v1726 = vmax.f32 %v1685, %v1710
        %v1727 = vmax.f32 %v1689, %v1711
        %v1728 = vmax.f32 %v1691, %v1712
        %v1729 = vmax.f32 %v1695, %v1713
        %v1730 = vmax.f32 %v1697, %v1714
        %v1731 = vld [vmem:[%s7] sm:$0xff]
        %v1732 = vld [vmem:[%s7 + $0x8] sm:$0xff]
        %v1733 = vld [vmem:[%s7 + $0x10] sm:$0xff]
        %v1734 = vld [vmem:[%s7 + $0x18] sm:$0xff]
        %v1735 = vld [vmem:[%s8] sm:$0xff]
        %v1736 = vld [vmem:[%s8 + $0x8] sm:$0xff]
        %v1737 = vld [vmem:[%s8 + $0x10] sm:$0xff]
        %v1738 = vld [vmem:[%s8 + $0x18] sm:$0xff]
        %1740 = vset.pattern.permute.xlu0 0
        %1741 = vperm.xlu0 %1740, %v1735
        %v1742 = vpop.permute.xlu0 %1741
        %1745 = vset.pattern.permute.xlu0 0
        %1746 = vperm.xlu0 %1745, %v1736
        %v1747 = vpop.permute.xlu0 %1746
        %1750 = vset.pattern.permute.xlu0 0
        %1751 = vperm.xlu0 %1750, %v1737
        %v1752 = vpop.permute.xlu0 %1751
        %1755 = vset.pattern.permute.xlu0 0
        %1756 = vperm.xlu0 %1755, %v1738
        %v1757 = vpop.permute.xlu0 %1756
        %vm1759 = vcmask 523264
        %v1761 = vsel %vm1759, %v1731, 0
        %v1764 = vsel %vm1759, %v1732, 0
        %v1767 = vsel %vm1759, %v1733, 0
        %v1770 = vsel %vm1759, %v1734, 0
        %1772 = vmatprep.subr.mxu0 %v1716
        %1773 = vmatpush1.msra.mxu0 %v1715
        %1774 = vmatprep.subr.mxu0 %v1718
        %1775 = vmatpush1.msra.mxu0 %v1717
        %1776 = vmatprep.subr.mxu0 %v1720
        %1777 = vmatpush1.msra.mxu0 %v1719
        %1778 = vmatprep.subr.mxu0 %v1722
        %1779 = vmatpush1.msra.mxu0 %v1721
        %1780 = vmatprep.subr.mxu0 %v1724
        %1781 = vmatpush1.msra.mxu0 %v1723
        %1782 = vmatprep.subr.mxu0 %v1726
        %1783 = vmatpush1.msra.mxu0 %v1725
        %1784 = vmatprep.subr.mxu0 %v1728
        %1785 = vmatpush1.msra.mxu0 %v1727
        %1786 = vmatprep.subr.mxu0 %v1730
        %1787 = vmatpush1.msra.mxu0 %v1729
        %1788 = vmatprep.subr.mxu0 0.0
        %1789 = vmatpush1.msra.mxu0 0.0
        %1790 = vmatprep.subr.mxu0 0.0
        %1791 = vmatpush1.msra.mxu0 0.0
        %1792 = vmatprep.subr.mxu0 0.0
        %1793 = vmatpush1.msra.mxu0 0.0
        %1794 = vmatprep.subr.mxu0 0.0
        %1795 = vmatpush1.msra.mxu0 0.0
        %1796 = vmatprep.subr.mxu0 0.0
        %1797 = vmatpush1.msra.mxu0 0.0
        %1798 = vmatprep.subr.mxu0 0.0
        %1799 = vmatpush1.msra.mxu0 0.0
        %1800 = vmatprep.subr.mxu0 0.0
        %1801 = vmatpush1.msra.mxu0 0.0
        %1802 = vmatprep.subr.mxu0 0.0
        %1803 = vmatpush1.msra.mxu0 0.0
        %1804 = vmatprep.subr.mxu0 0.0
        %1805 = vmatpush1.msra.mxu0 0.0
        %1806 = vmatprep.subr.mxu0 0.0
        %1807 = vmatpush1.msra.mxu0 0.0
        %1808 = vmatprep.subr.mxu0 0.0
        %1809 = vmatpush1.msra.mxu0 0.0
        %1810 = vmatprep.subr.mxu0 0.0
        %1811 = vmatpush1.msra.mxu0 0.0
        %1812 = vmatprep.subr.mxu0 0.0
        %1813 = vmatpush1.msra.mxu0 0.0
        %1814 = vmatprep.subr.mxu0 0.0
        %1815 = vmatpush1.msra.mxu0 0.0
        %1816 = vmatprep.subr.mxu0 0.0
        %1817 = vmatpush1.msra.mxu0 0.0
        %1818 = vmatprep.subr.mxu0 0.0
        %1819 = vmatpush1.msra.mxu0 0.0
        %1820 = vmatprep.subr.mxu0 0.0
        %1821 = vmatpush1.msra.mxu0 0.0
        %1822 = vmatprep.subr.mxu0 0.0
        %1823 = vmatpush1.msra.mxu0 0.0
        %1824 = vmatprep.subr.mxu0 0.0
        %1825 = vmatpush1.msra.mxu0 0.0
        %1826 = vmatprep.subr.mxu0 0.0
        %1827 = vmatpush1.msra.mxu0 0.0
        %1828 = vmatprep.subr.mxu0 0.0
        %1829 = vmatpush1.msra.mxu0 0.0
        %1830 = vmatprep.subr.mxu0 0.0
        %1831 = vmatpush1.msra.mxu0 0.0
        %1832 = vmatprep.subr.mxu0 0.0
        %1833 = vmatpush1.msra.mxu0 0.0
        %1834 = vmatprep.subr.mxu0 0.0
        %1835 = vmatpush1.msra.mxu0 0.0
        %1836 = vmatprep.mubr.f32.mxu0 0.0
        %1837 = vmatmul.mubr.f32.gmra.mrb[0].mxu0 %v1761
        %v1838 = vpop.f32.mrb[0].mxu0
        %v1839 = vadd.f32 %v1742, %v1838
        %v1840 = vpop.f32.mrb[0].mxu0
        %v1841 = vadd.f32 %v1742, %v1840
        %1842 = vmatprep.mubr.f32.mxu0 0.0
        %1843 = vmatmul.mubr.f32.gmra.mrb[0].mxu0 %v1764
        %v1844 = vpop.f32.mrb[0].mxu0
        %v1845 = vadd.f32 %v1747, %v1844
        %v1846 = vpop.f32.mrb[0].mxu0
        %v1847 = vadd.f32 %v1747, %v1846
        %1848 = vmatprep.mubr.f32.mxu0 0.0
        %1849 = vmatmul.mubr.f32.gmra.mrb[0].mxu0 %v1767
        %v1850 = vpop.f32.mrb[0].mxu0
        %v1851 = vadd.f32 %v1752, %v1850
        %v1852 = vpop.f32.mrb[0].mxu0
        %v1853 = vadd.f32 %v1752, %v1852
        %1854 = vmatprep.mubr.f32.mxu0 0.0
        %1855 = vmatmul.mubr.f32.gmra.mrb[0].mxu0 %v1770
        %v1856 = vpop.f32.mrb[0].mxu0
        %v1857 = vadd.f32 %v1757, %v1856
        %v1858 = vpop.f32.mrb[0].mxu0
        %v1859 = vadd.f32 %v1757, %v1858
        %1860 = vdwg.mxu0
        %v1861 = vmul.f32 %v1839, 0.01
        %v1862 = vmul.f32 %v1841, 0.01
        %v1863 = vmul.f32 %v1845, 0.01
        %v1864 = vmul.f32 %v1847, 0.01
        %v1865 = vmul.f32 %v1851, 0.01
        %v1866 = vmul.f32 %v1853, 0.01
        %v1867 = vmul.f32 %v1857, 0.01
        %v1868 = vmul.f32 %v1859, 0.01
        %v1869 = vmax.f32 %v1839, %v1861
        %v1870 = vmax.f32 %v1841, %v1862
        %v1871 = vmax.f32 %v1845, %v1863
        %v1872 = vmax.f32 %v1847, %v1864
        %v1873 = vmax.f32 %v1851, %v1865
        %v1874 = vmax.f32 %v1853, %v1866
        %v1875 = vmax.f32 %v1857, %v1867
        %v1876 = vmax.f32 %v1859, %v1868
        %v1877 = vld [vmem:[%s9] sm:$0xff]
        %v1878 = vld [vmem:[%s9 + $0x8] sm:$0xff]
        %v1879 = vld [vmem:[%s10] sm:$0xff]
        %v1880 = vld [vmem:[%s10 + $0x8] sm:$0xff]
        %1882 = vset.pattern.permute.xlu0 0
        %1883 = vperm.xlu0 %1882, %v1879
        %v1884 = vpop.permute.xlu0 %1883
        %1887 = vset.pattern.permute.xlu0 0
        %1888 = vperm.xlu0 %1887, %v1880
        %v1889 = vpop.permute.xlu0 %1888
        %vm1891 = vcmask 261120
        %v1893 = vsel %vm1891, %v1877, 0
        %v1896 = vsel %vm1891, %v1878, 0
        %1898 = vmatprep.subr.mxu0 %v1870
        %1899 = vmatpush1.msra.mxu0 %v1869
        %1900 = vmatprep.subr.mxu0 %v1872
        %1901 = vmatpush1.msra.mxu0 %v1871
        %1902 = vmatprep.subr.mxu0 %v1874
        %1903 = vmatpush1.msra.mxu0 %v1873
        %1904 = vmatprep.subr.mxu0 %v1876
        %1905 = vmatpush1.msra.mxu0 %v1875
        %1906 = vmatprep.subr.mxu0 0.0
        %1907 = vmatpush1.msra.mxu0 0.0
        %1908 = vmatprep.subr.mxu0 0.0
        %1909 = vmatpush1.msra.mxu0 0.0
        %1910 = vmatprep.subr.mxu0 0.0
        %1911 = vmatpush1.msra.mxu0 0.0
        %1912 = vmatprep.subr.mxu0 0.0
        %1913 = vmatpush1.msra.mxu0 0.0
        %1914 = vmatprep.subr.mxu0 0.0
        %1915 = vmatpush1.msra.mxu0 0.0
        %1916 = vmatprep.subr.mxu0 0.0
        %1917 = vmatpush1.msra.mxu0 0.0
        %1918 = vmatprep.subr.mxu0 0.0
        %1919 = vmatpush1.msra.mxu0 0.0
        %1920 = vmatprep.subr.mxu0 0.0
        %1921 = vmatpush1.msra.mxu0 0.0
        %1922 = vmatprep.subr.mxu0 0.0
        %1923 = vmatpush1.msra.mxu0 0.0
        %1924 = vmatprep.subr.mxu0 0.0
        %1925 = vmatpush1.msra.mxu0 0.0
        %1926 = vmatprep.subr.mxu0 0.0
        %1927 = vmatpush1.msra.mxu0 0.0
        %1928 = vmatprep.subr.mxu0 0.0
        %1929 = vmatpush1.msra.mxu0 0.0
        %1930 = vmatprep.subr.mxu0 0.0
        %1931 = vmatpush1.msra.mxu0 0.0
        %1932 = vmatprep.subr.mxu0 0.0
        %1933 = vmatpush1.msra.mxu0 0.0
        %1934 = vmatprep.subr.mxu0 0.0
        %1935 = vmatpush1.msra.mxu0 0.0
        %1936 = vmatprep.subr.mxu0 0.0
        %1937 = vmatpush1.msra.mxu0 0.0
        %1938 = vmatprep.subr.mxu0 0.0
        %1939 = vmatpush1.msra.mxu0 0.0
        %1940 = vmatprep.subr.mxu0 0.0
        %1941 = vmatpush1.msra.mxu0 0.0
        %1942 = vmatprep.subr.mxu0 0.0
        %1943 = vmatpush1.msra.mxu0 0.0
        %1944 = vmatprep.subr.mxu0 0.0
        %1945 = vmatpush1.msra.mxu0 0.0
        %1946 = vmatprep.subr.mxu0 0.0
        %1947 = vmatpush1.msra.mxu0 0.0
        %1948 = vmatprep.subr.mxu0 0.0
        %1949 = vmatpush1.msra.mxu0 0.0
        %1950 = vmatprep.subr.mxu0 0.0
        %1951 = vmatpush1.msra.mxu0 0.0
        %1952 = vmatprep.subr.mxu0 0.0
        %1953 = vmatpush1.msra.mxu0 0.0
        %1954 = vmatprep.subr.mxu0 0.0
        %1955 = vmatpush1.msra.mxu0 0.0
        %1956 = vmatprep.subr.mxu0 0.0
        %1957 = vmatpush1.msra.mxu0 0.0
        %1958 = vmatprep.subr.mxu0 0.0
        %1959 = vmatpush1.msra.mxu0 0.0
        %1960 = vmatprep.subr.mxu0 0.0
        %1961 = vmatpush1.msra.mxu0 0.0
        %1962 = vmatprep.mubr.f32.mxu0 0.0
        %1963 = vmatmul.mubr.f32.gmra.mrb[0].mxu0 %v1893
        %v1964 = vpop.f32.mrb[0].mxu0
        %v1965 = vadd.f32 %v1884, %v1964
        %v1966 = vpop.f32.mrb[0].mxu0
        %v1967 = vadd.f32 %v1884, %v1966
        %1968 = vmatprep.mubr.f32.mxu0 0.0
        %1969 = vmatmul.mubr.f32.gmra.mrb[0].mxu0 %v1896
        %v1970 = vpop.f32.mrb[0].mxu0
        %v1971 = vadd.f32 %v1889, %v1970
        %v1972 = vpop.f32.mrb[0].mxu0
        %v1973 = vadd.f32 %v1889, %v1972
        %1974 = vdwg.mxu0
        %v1975 = vmul.f32 %v1965, 0.01
        %v1976 = vmul.f32 %v1967, 0.01
        %v1977 = vmul.f32 %v1971, 0.01
        %v1978 = vmul.f32 %v1973, 0.01
        %v1979 = vmax.f32 %v1965, %v1975
        %v1980 = vmax.f32 %v1967, %v1976
        %v1981 = vmax.f32 %v1971, %v1977
        %v1982 = vmax.f32 %v1973, %v1978
        %v1983 = vld [vmem:[%s11] sm:$0xff]
        %v1984 = vld [vmem:[%s12] sm:$0xff]
        %1986 = vset.pattern.permute.xlu0 0
        %1987 = vperm.xlu0 %1986, %v1984
        %v1988 = vpop.permute.xlu0 %1987
        %v1991 = vsel %vm695, %v1983, 0
        %1993 = vmatprep.subr.mxu0 %v1980
        %1994 = vmatpush1.msra.mxu0 %v1979
        %1995 = vmatprep.subr.mxu0 %v1982
        %1996 = vmatpush1.msra.mxu0 %v1981
        %1997 = vmatprep.subr.mxu0 0.0
        %1998 = vmatpush1.msra.mxu0 0.0
        %1999 = vmatprep.subr.mxu0 0.0
        %2000 = vmatpush1.msra.mxu0 0.0
        %2001 = vmatprep.subr.mxu0 0.0
        %2002 = vmatpush1.msra.mxu0 0.0
        %2003 = vmatprep.subr.mxu0 0.0
        %2004 = vmatpush1.msra.mxu0 0.0
        %2005 = vmatprep.subr.mxu0 0.0
        %2006 = vmatpush1.msra.mxu0 0.0
        %2007 = vmatprep.subr.mxu0 0.0
        %2008 = vmatpush1.msra.mxu0 0.0
        %2009 = vmatprep.subr.mxu0 0.0
        %2010 = vmatpush1.msra.mxu0 0.0
        %2011 = vmatprep.subr.mxu0 0.0
        %2012 = vmatpush1.msra.mxu0 0.0
        %2013 = vmatprep.subr.mxu0 0.0
        %2014 = vmatpush1.msra.mxu0 0.0
        %2015 = vmatprep.subr.mxu0 0.0
        %2016 = vmatpush1.msra.mxu0 0.0
        %2017 = vmatprep.subr.mxu0 0.0
        %2018 = vmatpush1.msra.mxu0 0.0
        %2019 = vmatprep.subr.mxu0 0.0
        %2020 = vmatpush1.msra.mxu0 0.0
        %2021 = vmatprep.subr.mxu0 0.0
        %2022 = vmatpush1.msra.mxu0 0.0
        %2023 = vmatprep.subr.mxu0 0.0
        %2024 = vmatpush1.msra.mxu0 0.0
        %2025 = vmatprep.subr.mxu0 0.0
        %2026 = vmatpush1.msra.mxu0 0.0
        %2027 = vmatprep.subr.mxu0 0.0
        %2028 = vmatpush1.msra.mxu0 0.0
        %2029 = vmatprep.subr.mxu0 0.0
        %2030 = vmatpush1.msra.mxu0 0.0
        %2031 = vmatprep.subr.mxu0 0.0
        %2032 = vmatpush1.msra.mxu0 0.0
        %2033 = vmatprep.subr.mxu0 0.0
        %2034 = vmatpush1.msra.mxu0 0.0
        %2035 = vmatprep.subr.mxu0 0.0
        %2036 = vmatpush1.msra.mxu0 0.0
        %2037 = vmatprep.subr.mxu0 0.0
        %2038 = vmatpush1.msra.mxu0 0.0
        %2039 = vmatprep.subr.mxu0 0.0
        %2040 = vmatpush1.msra.mxu0 0.0
        %2041 = vmatprep.subr.mxu0 0.0
        %2042 = vmatpush1.msra.mxu0 0.0
        %2043 = vmatprep.subr.mxu0 0.0
        %2044 = vmatpush1.msra.mxu0 0.0
        %2045 = vmatprep.subr.mxu0 0.0
        %2046 = vmatpush1.msra.mxu0 0.0
        %2047 = vmatprep.subr.mxu0 0.0
        %2048 = vmatpush1.msra.mxu0 0.0
        %2049 = vmatprep.subr.mxu0 0.0
        %2050 = vmatpush1.msra.mxu0 0.0
        %2051 = vmatprep.subr.mxu0 0.0
        %2052 = vmatpush1.msra.mxu0 0.0
        %2053 = vmatprep.subr.mxu0 0.0
        %2054 = vmatpush1.msra.mxu0 0.0
        %2055 = vmatprep.subr.mxu0 0.0
        %2056 = vmatpush1.msra.mxu0 0.0
        %2057 = vmatprep.mubr.f32.mxu0 0.0
        %2058 = vmatmul.mubr.f32.gmra.mrb[0].mxu0 %v1991
        %v2059 = vpop.f32.mrb[0].mxu0
        %v2060 = vadd.f32 %v1988, %v2059
        %v2061 = vpop.f32.mrb[0].mxu0
        %v2062 = vadd.f32 %v1988, %v2061
        %2063 = vdwg.mxu0
        %v2064 = vmax.f32 %v2060, 0.0
        %v2065 = vmax.f32 %v2062, 0.0
        %2066 = vst [vmem:[%s464] sm:$0xff] %v2064
        %2067 = vst [vmem:[%s464 + $0x8] sm:$0xff] %v2065
        %s2068 = sand.u32 %s313, 1
        %s2069 = scalar_lea.sflag [#allocation4], %s2068
        %s2070 = sand.u32 %s313, 1
        %s2071 = smul.addr %s2070, 16
        %s2072 = scalar_lea.vmem [#allocation3], %s2071
        // Predicated region
        $region96: #{tpu_custom_call.1} parent=90 // pred_check
          %p2073 = pneg %p323
        $region97: #{tpu_custom_call.1} parent=90 // pred_check_branch
          %2075 = sbr.rel (%p2073) target = $region99
        $region98: #{tpu_custom_call.1} parent=90 // pred_region
          %s2076 = smul.u32 2, %s27
          %s2078 = ssub.s32 256, 256
          %2079 = vsyncadd %s2069, %s2078
          %s2080 = smul.addr %s2076, 128
          %s2081 = scalar_lea.hbm %s13, %s2080
          %s2083 = sshll.u32 %s2072, 4
          %s2084 = int_to_ptr.vmem [resolvable:$true] %s2083
          %2086 = dma.vmem_to_hbm [thread:$0]  %s2084, 256, %s2081, %s2069
        $region99: #{tpu_custom_call.1} parent=90 // pred_fallthru
          _
      $region91: #{tpu_custom_call.1} parent=5 // pred_fallthru
        _
      %p2087 = scmp.le.s32.totalorder 2, %s22
      // Predicated region
      $region100: #{tpu_custom_call.1} parent=5 // pred_check
        %p2088 = pneg %p2087
      $region101: #{tpu_custom_call.1} parent=5 // pred_check_branch
        %2090 = sbr.rel (%p2088) target = $region103
      $region102: #{tpu_custom_call.1} parent=5 // pred_region
        %s2091 = ssub.s32 %s22, 2
        // Predicated region
        $region104: #{tpu_custom_call.1} parent=102 // pred_check
          %p2092 = pneg %p329
        $region105: #{tpu_custom_call.1} parent=102 // pred_check_branch
          %2094 = sbr.rel (%p2092) target = $region107
        $region106: #{tpu_custom_call.1} parent=102 // pred_region
          %s2095 = sand.u32 %s314, 1
          %s2096 = scalar_lea.sflag [#allocation4], %s2095
          %s2097 = sand.u32 %s314, 1
          %s2098 = smul.addr %s2097, 16
          %s2099 = scalar_lea.vmem [#allocation3], %s2098
          %2100 = dma.done %s2096, 256
        $region107: #{tpu_custom_call.1} parent=102 // pred_fallthru
          _
      $region103: #{tpu_custom_call.1} parent=5 // pred_fallthru
        _
    $region6: #{tpu_custom_call.1} parent=1 // loop_footer
      %s26 = sadd.s32 1, %s22
    $region7: #{tpu_custom_call.1} parent=1 // loop_footer_branch
      %21 = sbr.rel target = $region3
    $region8: #{tpu_custom_call.1} parent=1 // loop_exit
      _
    %2101 = vsyncpa [#allocation4], 1
    %s2102 = scalar_lea.sflag [#allocation4], 1
    %2103 = vsyncpa %s2102, 1

</llo_original>
